<compile_context>
chip_gen: v7x
topology: tpu7x:2x2x1
jax: 0.10.0
libtpu: 0.0.40
codegen_flags: <defaults>
</compile_context>

<pallas_src>
import functools

import jax
import jax.numpy as jnp
from jax import lax
from jax.experimental import pallas as pl
from jax.experimental.pallas import tpu as pltpu


# --------------------------- Parameter packing ------------------------------

_PARAM_ORDER = ("w_ih_t", "w_hh_t", "w1o_t", "w1h_t", "w2_t", "w3_t",
                "b_lstm", "b1", "b2", "b3")


def pack_decider2_params(params):
    """Pack all weights/biases into one (rows, C) f32 buffer.

    Every segment is padded to C columns and to an 8-row boundary so every
    in-kernel slice is (sublane, lane)-aligned and static.  Returns the packed
    buffer and a dict of python-int row offsets.
    """
    C = max(int(p.shape[1]) for p in (params[k] for k in _PARAM_ORDER))
    pieces, offsets, cur = [], {}, 0
    for name in _PARAM_ORDER:
        w = jnp.asarray(params[name], jnp.float32)
        r, c = int(w.shape[0]), int(w.shape[1])
        pad_r = (-r) % 8
        pieces.append(jnp.pad(w, ((0, pad_r), (0, C - c))))
        offsets[name] = cur
        cur += r + pad_r
    packed = jnp.concatenate(pieces, axis=0)
    return packed, offsets, C


# ----------------------------- Pallas kernel --------------------------------

def make_decider2_kernel(seq, in_features, H, T, L, A, off):
    """Builds the kernel with all shapes / packed-buffer offsets static."""
    fourH = 4 * H

    def kernel(x_ref, other_ref, p_ref, out_ref):
        f32 = jnp.float32
        # Static slices of the single packed parameter buffer.
        w_ih = p_ref[off["w_ih_t"]:off["w_ih_t"] + in_features, 0:fourH]
        w_hh = p_ref[off["w_hh_t"]:off["w_hh_t"] + H, 0:fourH]
        w1o = p_ref[off["w1o_t"]:off["w1o_t"] + T, 0:L]
        w1h = p_ref[off["w1h_t"]:off["w1h_t"] + H, 0:L]
        w2 = p_ref[off["w2_t"]:off["w2_t"] + L, 0:L]
        w3 = p_ref[off["w3_t"]:off["w3_t"] + L, 0:A]
        b_l = p_ref[off["b_lstm"]:off["b_lstm"] + 1, 0:fourH]
        b1 = p_ref[off["b1"]:off["b1"] + 1, 0:L]
        b2 = p_ref[off["b2"]:off["b2"] + 1, 0:L]
        b3 = p_ref[off["b3"]:off["b3"] + 1, 0:A]

        # Input projection for every timestep at once: (seq, 4H), kept live.
        xg = jnp.dot(x_ref[...], w_ih, preferred_element_type=f32) + b_l

        # Sequential LSTM recurrence, fully unrolled; state carried in vregs.
        # PyTorch gate order: i, f, g, o.
        h = jnp.zeros((1, H), f32)
        c = jnp.zeros((1, H), f32)
        for t in range(seq):
            gates = xg[t:t + 1, :] + jnp.dot(
                h, w_hh, preferred_element_type=f32)
            sig = jax.nn.sigmoid(gates)   # one EUP pass covers i, f, o lanes
            tnh = jnp.tanh(gates)         # one EUP pass covers g lanes
            i_g = sig[:, 0:H]
            f_g = sig[:, H:2 * H]
            g_g = tnh[:, 2 * H:3 * H]
            o_g = sig[:, 3 * H:4 * H]
            c = f_g * c + i_g * g_g
            h = o_g * jnp.tanh(c)

        # MLP head; linear1 split over [other | h] avoids a lane concat.
        z1 = jnp.maximum(
            jnp.dot(other_ref[...], w1o, preferred_element_type=f32)
            + jnp.dot(h, w1h, preferred_element_type=f32) + b1, 0.0)
        z2 = jnp.maximum(
            jnp.dot(z1, w2, preferred_element_type=f32) + b2, 0.0)
        z3 = jnp.dot(z2, w3, preferred_element_type=f32) + b3

        # Softmax over the action dimension.
        m = jnp.max(z3, axis=1, keepdims=True)
        p = jnp.exp(z3 - m)
        denom = jnp.sum(p, axis=1, keepdims=True)
        out_ref[...] = p * pl.reciprocal(denom, approx=False)

    return kernel


# ------------------------------ Host wrapper ---------------------------------

@functools.partial(jax.jit, static_argnames=())
def _noop(x):  # tiny helper so packing can be jitted together with the call
    return x


def decider2_forward(encodings, other, params):
    """encodings: (seq, in_features) f32, other: (T,) f32."""
    seq, in_features = encodings.shape
    H = params["w_hh_t"].shape[0]
    T = params["w1o_t"].shape[0]
    L = params["w2_t"].shape[0]
    A = params["w3_t"].shape[1]

    # In a serving loop this packing would be done once and cached.
    packed, off, _ = pack_decider2_params(params)
    kernel = make_decider2_kernel(seq, in_features, H, T, L, A, off)

    vmem = pl.BlockSpec(memory_space=pltpu.MemorySpace.VMEM)
    return pl.pallas_call(
        kernel,
        out_shape=jax.ShapeDtypeStruct((1, A), jnp.float32),
        in_specs=[vmem, vmem, vmem],
        out_specs=vmem,
    )(encodings, other.reshape(1, T), packed)


# --------------------------- Pure-JAX reference -------------------------------

def decider2_reference(encodings, other, params):
    H = params["w_hh_t"].shape[0]
    xg = encodings @ params["w_ih_t"] + params["b_lstm"]   # (seq, 4H)

    def step(carry, xg_t):
        h, c = carry
        gates = xg_t[None, :] + h @ params["w_hh_t"]
        i_g = jax.nn.sigmoid(gates[:, 0:H])
        f_g = jax.nn.sigmoid(gates[:, H:2 * H])
        g_g = jnp.tanh(gates[:, 2 * H:3 * H])
        o_g = jax.nn.sigmoid(gates[:, 3 * H:4 * H])
        c = f_g * c + i_g * g_g
        h = o_g * jnp.tanh(c)
        return (h, c), None

    h0 = jnp.zeros((1, H), jnp.float32)
    (h, _), _ = lax.scan(step, (h0, h0), xg)

    z1 = jax.nn.relu(other[None, :] @ params["w1o_t"]
                     + h @ params["w1h_t"] + params["b1"])
    z2 = jax.nn.relu(z1 @ params["w2_t"] + params["b2"])
    z3 = z2 @ params["w3_t"] + params["b3"]
    return jax.nn.softmax(z3, axis=1)


# ---------------------------------- Main --------------------------------------

if __name__ == "__main__":
    # Small shapes consistent with the module's forward.
    IN_FEATURES = 32        # in_features
    H = 32                  # decider_lstm_size
    T = 8                   # time_encoding_size
    L = 64                  # decider_linear_size
    A = 8                   # max_actions
    SEQ = 8                 # sequence length of input['encodings']

    key = jax.random.PRNGKey(0)
    keys = jax.random.split(key, 16)

    # Deterministic synthetic parameters (PyTorch gate order i,f,g,o baked in).
    params = {
        "w_ih_t": 0.1 * jax.random.normal(keys[0], (IN_FEATURES, 4 * H), jnp.float32),
        "w_hh_t": 0.1 * jax.random.normal(keys[1], (H, 4 * H), jnp.float32),
        # combined bias = b_ih + b_hh
        "b_lstm": 0.1 * jax.random.normal(keys[2], (1, 4 * H), jnp.float32),
        # linear1 weight (L, T+H) split by concat order [other, lstm_features]
        "w1o_t": 0.1 * jax.random.normal(keys[3], (T, L), jnp.float32),
        "w1h_t": 0.1 * jax.random.normal(keys[4], (H, L), jnp.float32),
        "b1": 0.1 * jax.random.normal(keys[5], (1, L), jnp.float32),
        "w2_t": 0.1 * jax.random.normal(keys[6], (L, L), jnp.float32),
        "b2": 0.1 * jax.random.normal(keys[7], (1, L), jnp.float32),
        "w3_t": 0.1 * jax.random.normal(keys[8], (L, A), jnp.float32),
        "b3": 0.1 * jax.random.normal(keys[9], (1, A), jnp.float32),
    }

    # Deterministic inputs: input['encodings'] (seq, in_features), input['other'] (T,)
    encodings = jax.random.normal(keys[10], (SEQ, IN_FEATURES), jnp.float32)
    other = jax.random.normal(keys[11], (T,), jnp.float32)

    out = decider2_forward(encodings, other, params)
    out = jax.block_until_ready(out)

    ref = decider2_reference(encodings, other, params)
    ref = jax.block_until_ready(ref)

    assert out.shape == (1, A)
    assert jnp.all(jnp.isfinite(out))
    assert jnp.allclose(jnp.sum(out), 1.0, atol=1e-5)
    assert jnp.allclose(out, ref, atol=1e-5, rtol=1e-5)

    print("KERNEL_OK")
</pallas_src>

<mosaic_0001>
module attributes {stable_mosaic.version = 11 : i64} {
  func.func @kernel(%arg0: memref<8x32xf32, #tpu.memory_space<vmem>>, %arg1: memref<1x8xf32, #tpu.memory_space<vmem>>, %arg2: memref<264x128xf32, #tpu.memory_space<vmem>>, %arg3: memref<1x8xf32, #tpu.memory_space<vmem>>) attributes {dimension_semantics = [], scalar_prefetch = 0 : i64, scratch_operands = 0 : i64, tpu.core_type = #tpu.core_type<tc>} {
    %c0 = arith.constant 0 : index
    %c0_0 = arith.constant 0 : index
    %0 = vector.load %arg2[%c0, %c0_0] : memref<264x128xf32, #tpu.memory_space<vmem>>, vector<32x128xf32>
    %c32 = arith.constant 32 : index
    %c0_1 = arith.constant 0 : index
    %1 = vector.load %arg2[%c32, %c0_1] : memref<264x128xf32, #tpu.memory_space<vmem>>, vector<32x128xf32>
    %c64 = arith.constant 64 : index
    %c0_2 = arith.constant 0 : index
    %2 = vector.load %arg2[%c64, %c0_2] : memref<264x128xf32, #tpu.memory_space<vmem>>, vector<8x64xf32>
    %c72 = arith.constant 72 : index
    %c0_3 = arith.constant 0 : index
    %3 = vector.load %arg2[%c72, %c0_3] : memref<264x128xf32, #tpu.memory_space<vmem>>, vector<32x64xf32>
    %c104 = arith.constant 104 : index
    %c0_4 = arith.constant 0 : index
    %4 = vector.load %arg2[%c104, %c0_4] : memref<264x128xf32, #tpu.memory_space<vmem>>, vector<64x64xf32>
    %c168 = arith.constant 168 : index
    %c0_5 = arith.constant 0 : index
    %5 = vector.load %arg2[%c168, %c0_5] : memref<264x128xf32, #tpu.memory_space<vmem>>, vector<64x8xf32>
    %c232 = arith.constant 232 : index
    %c0_6 = arith.constant 0 : index
    %6 = vector.load %arg2[%c232, %c0_6] : memref<264x128xf32, #tpu.memory_space<vmem>>, vector<1x128xf32>
    %c240 = arith.constant 240 : index
    %c0_7 = arith.constant 0 : index
    %7 = vector.load %arg2[%c240, %c0_7] : memref<264x128xf32, #tpu.memory_space<vmem>>, vector<1x64xf32>
    %c248 = arith.constant 248 : index
    %c0_8 = arith.constant 0 : index
    %8 = vector.load %arg2[%c248, %c0_8] : memref<264x128xf32, #tpu.memory_space<vmem>>, vector<1x64xf32>
    %c256 = arith.constant 256 : index
    %c0_9 = arith.constant 0 : index
    %9 = vector.load %arg2[%c256, %c0_9] : memref<264x128xf32, #tpu.memory_space<vmem>>, vector<1x8xf32>
    %c0_10 = arith.constant 0 : index
    %c0_11 = arith.constant 0 : index
    %10 = vector.load %arg0[%c0_10, %c0_11] : memref<8x32xf32, #tpu.memory_space<vmem>>, vector<8x32xf32>
    %cst = arith.constant dense<0.000000e+00> : vector<8x128xf32>
    %11 = tpu.matmul %10, %0, %cst {dimension_numbers = #tpu.dot_dimension_numbers<[1], [0], [0], [1], [0, 0, 1, 1], [], []>} : vector<8x32xf32>, vector<32x128xf32>, vector<8x128xf32> -> vector<8x128xf32>
    %12 = vector.broadcast %6 : vector<1x128xf32> to vector<8x128xf32>
    %13 = arith.addf %11, %12 : vector<8x128xf32>
    %cst_12 = arith.constant 0.000000e+00 : f32
    %14 = vector.broadcast %cst_12 : f32 to vector<1x32xf32>
    %cst_13 = arith.constant 0.000000e+00 : f32
    %15 = vector.broadcast %cst_13 : f32 to vector<1x32xf32>
    %16 = vector.extract_strided_slice %13 {offsets = [0, 0], sizes = [1, 128], strides = [1, 1]} : vector<8x128xf32> to vector<1x128xf32>
    %cst_14 = arith.constant dense<0.000000e+00> : vector<1x128xf32>
    %17 = tpu.matmul %14, %1, %cst_14 {dimension_numbers = #tpu.dot_dimension_numbers<[1], [0], [0], [1], [0, 0, 1, 1], [], []>} : vector<1x32xf32>, vector<32x128xf32>, vector<1x128xf32> -> vector<1x128xf32>
    %18 = arith.addf %16, %17 : vector<1x128xf32>
    %19 = arith.negf %18 : vector<1x128xf32>
    %20 = math.exp %19 : vector<1x128xf32>
    %cst_15 = arith.constant 1.000000e+00 : f32
    %21 = vector.broadcast %cst_15 : f32 to vector<1x128xf32>
    %22 = arith.addf %21, %20 : vector<1x128xf32>
    %23 = arith.divf %21, %22 : vector<1x128xf32>
    %24 = math.tanh %18 : vector<1x128xf32>
    %25 = vector.extract_strided_slice %23 {offsets = [0, 0], sizes = [1, 32], strides = [1, 1]} : vector<1x128xf32> to vector<1x32xf32>
    %26 = vector.extract_strided_slice %23 {offsets = [0, 32], sizes = [1, 32], strides = [1, 1]} : vector<1x128xf32> to vector<1x32xf32>
    %27 = vector.extract_strided_slice %24 {offsets = [0, 64], sizes = [1, 32], strides = [1, 1]} : vector<1x128xf32> to vector<1x32xf32>
    %28 = vector.extract_strided_slice %23 {offsets = [0, 96], sizes = [1, 32], strides = [1, 1]} : vector<1x128xf32> to vector<1x32xf32>
    %29 = arith.mulf %26, %15 : vector<1x32xf32>
    %30 = arith.mulf %25, %27 : vector<1x32xf32>
    %31 = arith.addf %29, %30 : vector<1x32xf32>
    %32 = math.tanh %31 : vector<1x32xf32>
    %33 = arith.mulf %28, %32 : vector<1x32xf32>
    %34 = vector.extract_strided_slice %13 {offsets = [1, 0], sizes = [1, 128], strides = [1, 1]} : vector<8x128xf32> to vector<1x128xf32>
    %cst_16 = arith.constant dense<0.000000e+00> : vector<1x128xf32>
    %35 = tpu.matmul %33, %1, %cst_16 {dimension_numbers = #tpu.dot_dimension_numbers<[1], [0], [0], [1], [0, 0, 1, 1], [], []>} : vector<1x32xf32>, vector<32x128xf32>, vector<1x128xf32> -> vector<1x128xf32>
    %36 = arith.addf %34, %35 : vector<1x128xf32>
    %37 = arith.negf %36 : vector<1x128xf32>
    %38 = math.exp %37 : vector<1x128xf32>
    %cst_17 = arith.constant 1.000000e+00 : f32
    %39 = vector.broadcast %cst_17 : f32 to vector<1x128xf32>
    %40 = arith.addf %39, %38 : vector<1x128xf32>
    %41 = arith.divf %39, %40 : vector<1x128xf32>
    %42 = math.tanh %36 : vector<1x128xf32>
    %43 = vector.extract_strided_slice %41 {offsets = [0, 0], sizes = [1, 32], strides = [1, 1]} : vector<1x128xf32> to vector<1x32xf32>
    %44 = vector.extract_strided_slice %41 {offsets = [0, 32], sizes = [1, 32], strides = [1, 1]} : vector<1x128xf32> to vector<1x32xf32>
    %45 = vector.extract_strided_slice %42 {offsets = [0, 64], sizes = [1, 32], strides = [1, 1]} : vector<1x128xf32> to vector<1x32xf32>
    %46 = vector.extract_strided_slice %41 {offsets = [0, 96], sizes = [1, 32], strides = [1, 1]} : vector<1x128xf32> to vector<1x32xf32>
    %47 = arith.mulf %44, %31 : vector<1x32xf32>
    %48 = arith.mulf %43, %45 : vector<1x32xf32>
    %49 = arith.addf %47, %48 : vector<1x32xf32>
    %50 = math.tanh %49 : vector<1x32xf32>
    %51 = arith.mulf %46, %50 : vector<1x32xf32>
    %52 = vector.extract_strided_slice %13 {offsets = [2, 0], sizes = [1, 128], strides = [1, 1]} : vector<8x128xf32> to vector<1x128xf32>
    %cst_18 = arith.constant dense<0.000000e+00> : vector<1x128xf32>
    %53 = tpu.matmul %51, %1, %cst_18 {dimension_numbers = #tpu.dot_dimension_numbers<[1], [0], [0], [1], [0, 0, 1, 1], [], []>} : vector<1x32xf32>, vector<32x128xf32>, vector<1x128xf32> -> vector<1x128xf32>
    %54 = arith.addf %52, %53 : vector<1x128xf32>
    %55 = arith.negf %54 : vector<1x128xf32>
    %56 = math.exp %55 : vector<1x128xf32>
    %cst_19 = arith.constant 1.000000e+00 : f32
    %57 = vector.broadcast %cst_19 : f32 to vector<1x128xf32>
    %58 = arith.addf %57, %56 : vector<1x128xf32>
    %59 = arith.divf %57, %58 : vector<1x128xf32>
    %60 = math.tanh %54 : vector<1x128xf32>
    %61 = vector.extract_strided_slice %59 {offsets = [0, 0], sizes = [1, 32], strides = [1, 1]} : vector<1x128xf32> to vector<1x32xf32>
    %62 = vector.extract_strided_slice %59 {offsets = [0, 32], sizes = [1, 32], strides = [1, 1]} : vector<1x128xf32> to vector<1x32xf32>
    %63 = vector.extract_strided_slice %60 {offsets = [0, 64], sizes = [1, 32], strides = [1, 1]} : vector<1x128xf32> to vector<1x32xf32>
    %64 = vector.extract_strided_slice %59 {offsets = [0, 96], sizes = [1, 32], strides = [1, 1]} : vector<1x128xf32> to vector<1x32xf32>
    %65 = arith.mulf %62, %49 : vector<1x32xf32>
    %66 = arith.mulf %61, %63 : vector<1x32xf32>
    %67 = arith.addf %65, %66 : vector<1x32xf32>
    %68 = math.tanh %67 : vector<1x32xf32>
    %69 = arith.mulf %64, %68 : vector<1x32xf32>
    %70 = vector.extract_strided_slice %13 {offsets = [3, 0], sizes = [1, 128], strides = [1, 1]} : vector<8x128xf32> to vector<1x128xf32>
    %cst_20 = arith.constant dense<0.000000e+00> : vector<1x128xf32>
    %71 = tpu.matmul %69, %1, %cst_20 {dimension_numbers = #tpu.dot_dimension_numbers<[1], [0], [0], [1], [0, 0, 1, 1], [], []>} : vector<1x32xf32>, vector<32x128xf32>, vector<1x128xf32> -> vector<1x128xf32>
    %72 = arith.addf %70, %71 : vector<1x128xf32>
    %73 = arith.negf %72 : vector<1x128xf32>
    %74 = math.exp %73 : vector<1x128xf32>
    %cst_21 = arith.constant 1.000000e+00 : f32
    %75 = vector.broadcast %cst_21 : f32 to vector<1x128xf32>
    %76 = arith.addf %75, %74 : vector<1x128xf32>
    %77 = arith.divf %75, %76 : vector<1x128xf32>
    %78 = math.tanh %72 : vector<1x128xf32>
    %79 = vector.extract_strided_slice %77 {offsets = [0, 0], sizes = [1, 32], strides = [1, 1]} : vector<1x128xf32> to vector<1x32xf32>
    %80 = vector.extract_strided_slice %77 {offsets = [0, 32], sizes = [1, 32], strides = [1, 1]} : vector<1x128xf32> to vector<1x32xf32>
    %81 = vector.extract_strided_slice %78 {offsets = [0, 64], sizes = [1, 32], strides = [1, 1]} : vector<1x128xf32> to vector<1x32xf32>
    %82 = vector.extract_strided_slice %77 {offsets = [0, 96], sizes = [1, 32], strides = [1, 1]} : vector<1x128xf32> to vector<1x32xf32>
    %83 = arith.mulf %80, %67 : vector<1x32xf32>
    %84 = arith.mulf %79, %81 : vector<1x32xf32>
    %85 = arith.addf %83, %84 : vector<1x32xf32>
    %86 = math.tanh %85 : vector<1x32xf32>
    %87 = arith.mulf %82, %86 : vector<1x32xf32>
    %88 = vector.extract_strided_slice %13 {offsets = [4, 0], sizes = [1, 128], strides = [1, 1]} : vector<8x128xf32> to vector<1x128xf32>
    %cst_22 = arith.constant dense<0.000000e+00> : vector<1x128xf32>
    %89 = tpu.matmul %87, %1, %cst_22 {dimension_numbers = #tpu.dot_dimension_numbers<[1], [0], [0], [1], [0, 0, 1, 1], [], []>} : vector<1x32xf32>, vector<32x128xf32>, vector<1x128xf32> -> vector<1x128xf32>
    %90 = arith.addf %88, %89 : vector<1x128xf32>
    %91 = arith.negf %90 : vector<1x128xf32>
    %92 = math.exp %91 : vector<1x128xf32>
    %cst_23 = arith.constant 1.000000e+00 : f32
    %93 = vector.broadcast %cst_23 : f32 to vector<1x128xf32>
    %94 = arith.addf %93, %92 : vector<1x128xf32>
    %95 = arith.divf %93, %94 : vector<1x128xf32>
    %96 = math.tanh %90 : vector<1x128xf32>
    %97 = vector.extract_strided_slice %95 {offsets = [0, 0], sizes = [1, 32], strides = [1, 1]} : vector<1x128xf32> to vector<1x32xf32>
    %98 = vector.extract_strided_slice %95 {offsets = [0, 32], sizes = [1, 32], strides = [1, 1]} : vector<1x128xf32> to vector<1x32xf32>
    %99 = vector.extract_strided_slice %96 {offsets = [0, 64], sizes = [1, 32], strides = [1, 1]} : vector<1x128xf32> to vector<1x32xf32>
    %100 = vector.extract_strided_slice %95 {offsets = [0, 96], sizes = [1, 32], strides = [1, 1]} : vector<1x128xf32> to vector<1x32xf32>
    %101 = arith.mulf %98, %85 : vector<1x32xf32>
    %102 = arith.mulf %97, %99 : vector<1x32xf32>
    %103 = arith.addf %101, %102 : vector<1x32xf32>
    %104 = math.tanh %103 : vector<1x32xf32>
    %105 = arith.mulf %100, %104 : vector<1x32xf32>
    %106 = vector.extract_strided_slice %13 {offsets = [5, 0], sizes = [1, 128], strides = [1, 1]} : vector<8x128xf32> to vector<1x128xf32>
    %cst_24 = arith.constant dense<0.000000e+00> : vector<1x128xf32>
    %107 = tpu.matmul %105, %1, %cst_24 {dimension_numbers = #tpu.dot_dimension_numbers<[1], [0], [0], [1], [0, 0, 1, 1], [], []>} : vector<1x32xf32>, vector<32x128xf32>, vector<1x128xf32> -> vector<1x128xf32>
    %108 = arith.addf %106, %107 : vector<1x128xf32>
    %109 = arith.negf %108 : vector<1x128xf32>
    %110 = math.exp %109 : vector<1x128xf32>
    %cst_25 = arith.constant 1.000000e+00 : f32
    %111 = vector.broadcast %cst_25 : f32 to vector<1x128xf32>
    %112 = arith.addf %111, %110 : vector<1x128xf32>
    %113 = arith.divf %111, %112 : vector<1x128xf32>
    %114 = math.tanh %108 : vector<1x128xf32>
    %115 = vector.extract_strided_slice %113 {offsets = [0, 0], sizes = [1, 32], strides = [1, 1]} : vector<1x128xf32> to vector<1x32xf32>
    %116 = vector.extract_strided_slice %113 {offsets = [0, 32], sizes = [1, 32], strides = [1, 1]} : vector<1x128xf32> to vector<1x32xf32>
    %117 = vector.extract_strided_slice %114 {offsets = [0, 64], sizes = [1, 32], strides = [1, 1]} : vector<1x128xf32> to vector<1x32xf32>
    %118 = vector.extract_strided_slice %113 {offsets = [0, 96], sizes = [1, 32], strides = [1, 1]} : vector<1x128xf32> to vector<1x32xf32>
    %119 = arith.mulf %116, %103 : vector<1x32xf32>
    %120 = arith.mulf %115, %117 : vector<1x32xf32>
    %121 = arith.addf %119, %120 : vector<1x32xf32>
    %122 = math.tanh %121 : vector<1x32xf32>
    %123 = arith.mulf %118, %122 : vector<1x32xf32>
    %124 = vector.extract_strided_slice %13 {offsets = [6, 0], sizes = [1, 128], strides = [1, 1]} : vector<8x128xf32> to vector<1x128xf32>
    %cst_26 = arith.constant dense<0.000000e+00> : vector<1x128xf32>
    %125 = tpu.matmul %123, %1, %cst_26 {dimension_numbers = #tpu.dot_dimension_numbers<[1], [0], [0], [1], [0, 0, 1, 1], [], []>} : vector<1x32xf32>, vector<32x128xf32>, vector<1x128xf32> -> vector<1x128xf32>
    %126 = arith.addf %124, %125 : vector<1x128xf32>
    %127 = arith.negf %126 : vector<1x128xf32>
    %128 = math.exp %127 : vector<1x128xf32>
    %cst_27 = arith.constant 1.000000e+00 : f32
    %129 = vector.broadcast %cst_27 : f32 to vector<1x128xf32>
    %130 = arith.addf %129, %128 : vector<1x128xf32>
    %131 = arith.divf %129, %130 : vector<1x128xf32>
    %132 = math.tanh %126 : vector<1x128xf32>
    %133 = vector.extract_strided_slice %131 {offsets = [0, 0], sizes = [1, 32], strides = [1, 1]} : vector<1x128xf32> to vector<1x32xf32>
    %134 = vector.extract_strided_slice %131 {offsets = [0, 32], sizes = [1, 32], strides = [1, 1]} : vector<1x128xf32> to vector<1x32xf32>
    %135 = vector.extract_strided_slice %132 {offsets = [0, 64], sizes = [1, 32], strides = [1, 1]} : vector<1x128xf32> to vector<1x32xf32>
    %136 = vector.extract_strided_slice %131 {offsets = [0, 96], sizes = [1, 32], strides = [1, 1]} : vector<1x128xf32> to vector<1x32xf32>
    %137 = arith.mulf %134, %121 : vector<1x32xf32>
    %138 = arith.mulf %133, %135 : vector<1x32xf32>
    %139 = arith.addf %137, %138 : vector<1x32xf32>
    %140 = math.tanh %139 : vector<1x32xf32>
    %141 = arith.mulf %136, %140 : vector<1x32xf32>
    %142 = vector.extract_strided_slice %13 {offsets = [7, 0], sizes = [1, 128], strides = [1, 1]} : vector<8x128xf32> to vector<1x128xf32>
    %cst_28 = arith.constant dense<0.000000e+00> : vector<1x128xf32>
    %143 = tpu.matmul %141, %1, %cst_28 {dimension_numbers = #tpu.dot_dimension_numbers<[1], [0], [0], [1], [0, 0, 1, 1], [], []>} : vector<1x32xf32>, vector<32x128xf32>, vector<1x128xf32> -> vector<1x128xf32>
    %144 = arith.addf %142, %143 : vector<1x128xf32>
    %145 = arith.negf %144 : vector<1x128xf32>
    %146 = math.exp %145 : vector<1x128xf32>
    %cst_29 = arith.constant 1.000000e+00 : f32
    %147 = vector.broadcast %cst_29 : f32 to vector<1x128xf32>
    %148 = arith.addf %147, %146 : vector<1x128xf32>
    %149 = arith.divf %147, %148 : vector<1x128xf32>
    %150 = math.tanh %144 : vector<1x128xf32>
    %151 = vector.extract_strided_slice %149 {offsets = [0, 0], sizes = [1, 32], strides = [1, 1]} : vector<1x128xf32> to vector<1x32xf32>
    %152 = vector.extract_strided_slice %149 {offsets = [0, 32], sizes = [1, 32], strides = [1, 1]} : vector<1x128xf32> to vector<1x32xf32>
    %153 = vector.extract_strided_slice %150 {offsets = [0, 64], sizes = [1, 32], strides = [1, 1]} : vector<1x128xf32> to vector<1x32xf32>
    %154 = vector.extract_strided_slice %149 {offsets = [0, 96], sizes = [1, 32], strides = [1, 1]} : vector<1x128xf32> to vector<1x32xf32>
    %155 = arith.mulf %152, %139 : vector<1x32xf32>
    %156 = arith.mulf %151, %153 : vector<1x32xf32>
    %157 = arith.addf %155, %156 : vector<1x32xf32>
    %158 = math.tanh %157 : vector<1x32xf32>
    %159 = arith.mulf %154, %158 : vector<1x32xf32>
    %c0_30 = arith.constant 0 : index
    %c0_31 = arith.constant 0 : index
    %160 = vector.load %arg1[%c0_30, %c0_31] : memref<1x8xf32, #tpu.memory_space<vmem>>, vector<1x8xf32>
    %cst_32 = arith.constant dense<0.000000e+00> : vector<1x64xf32>
    %161 = tpu.matmul %160, %2, %cst_32 {dimension_numbers = #tpu.dot_dimension_numbers<[1], [0], [0], [1], [0, 0, 1, 1], [], []>} : vector<1x8xf32>, vector<8x64xf32>, vector<1x64xf32> -> vector<1x64xf32>
    %cst_33 = arith.constant dense<0.000000e+00> : vector<1x64xf32>
    %162 = tpu.matmul %159, %3, %cst_33 {dimension_numbers = #tpu.dot_dimension_numbers<[1], [0], [0], [1], [0, 0, 1, 1], [], []>} : vector<1x32xf32>, vector<32x64xf32>, vector<1x64xf32> -> vector<1x64xf32>
    %163 = arith.addf %161, %162 : vector<1x64xf32>
    %164 = arith.addf %163, %7 : vector<1x64xf32>
    %cst_34 = arith.constant 0.000000e+00 : f32
    %165 = vector.broadcast %cst_34 : f32 to vector<1x64xf32>
    %166 = arith.maximumf %164, %165 : vector<1x64xf32>
    %cst_35 = arith.constant dense<0.000000e+00> : vector<1x64xf32>
    %167 = tpu.matmul %166, %4, %cst_35 {dimension_numbers = #tpu.dot_dimension_numbers<[1], [0], [0], [1], [0, 0, 1, 1], [], []>} : vector<1x64xf32>, vector<64x64xf32>, vector<1x64xf32> -> vector<1x64xf32>
    %168 = arith.addf %167, %8 : vector<1x64xf32>
    %cst_36 = arith.constant 0.000000e+00 : f32
    %169 = vector.broadcast %cst_36 : f32 to vector<1x64xf32>
    %170 = arith.maximumf %168, %169 : vector<1x64xf32>
    %cst_37 = arith.constant dense<0.000000e+00> : vector<1x8xf32>
    %171 = tpu.matmul %170, %5, %cst_37 {dimension_numbers = #tpu.dot_dimension_numbers<[1], [0], [0], [1], [0, 0, 1, 1], [], []>} : vector<1x64xf32>, vector<64x8xf32>, vector<1x8xf32> -> vector<1x8xf32>
    %172 = arith.addf %171, %9 : vector<1x8xf32>
    %cst_38 = arith.constant dense<0xFF800000> : vector<1xf32>
    %173 = vector.multi_reduction <maximumf>, %172, %cst_38 [1] : vector<1x8xf32> to vector<1xf32>
    %174 = vector.shape_cast %173 : vector<1xf32> to vector<1x1xf32>
    %175 = vector.broadcast %174 : vector<1x1xf32> to vector<1x8xf32>
    %176 = arith.subf %172, %175 : vector<1x8xf32>
    %177 = math.exp %176 : vector<1x8xf32>
    %cst_39 = arith.constant dense<0.000000e+00> : vector<1xf32>
    %178 = vector.multi_reduction <add>, %177, %cst_39 [1] : vector<1x8xf32> to vector<1xf32>
    %179 = vector.shape_cast %178 : vector<1xf32> to vector<1x1xf32>
    %180 = tpu.reciprocal %179 : vector<1x1xf32> -> vector<1x1xf32>
    %181 = vector.broadcast %180 : vector<1x1xf32> to vector<1x8xf32>
    %182 = arith.mulf %177, %181 : vector<1x8xf32>
    %c0_40 = arith.constant 0 : index
    %c0_41 = arith.constant 0 : index
    %183 = vector.load %arg3[%c0_40, %c0_41] : memref<1x8xf32, #tpu.memory_space<vmem>>, vector<1x8xf32>
    tpu.vector_store %arg3[%c0_40, %c0_41], %182 {strides = array<i32>} : memref<1x8xf32, #tpu.memory_space<vmem>>, vector<1x8xf32>,
    return
  }
}

</mosaic_0001>

<llo_original>
// kernel: tpu_custom_call.1
$region0: #{tpu_custom_call.1}
  #allocation0 [shape = 'u32[]', space=smem, size = 0x4, offset = 0x4, fixed_abs, tag = 'smem constant byte address 0x4 - core index']
  #allocation1 [shape = 'u32[144,128]{1,0:T(1,128)}', space=vmem, size = 0x12000, scoped, tag = 'internal scratch']
  %s0 = inlined_call_operand.hbm [shape: f32[8,32], index: 0, kind: input, shape index: {}]
  %s1 = inlined_call_operand.vmem [shape: f32[1,8], index: 1, kind: input, shape index: {}]
  %s2 = inlined_call_operand.hbm [shape: f32[264,128], index: 2, kind: input, shape index: {}]
  %s3 = inlined_call_operand.hbm [shape: f32[1,8], index: 3, kind: output, shape index: {}]
  %s4 = sld [smem:[#allocation0]]
  $region30: #{tpu_custom_call.1} parent=0
    _
  %s6 = ssub.s32 1, %s4
  %s7 = scalar_select 0, %s6, %s4
  $region1: #{tpu_custom_call.1} parent=0
    #allocation2 [shape = 'u8[4096]{0}', space=vmem, size = 0x1000, scoped, tag = 'input window, operand 0, single buffered']
    #allocation3 [shape = 's32[1]{0}', space=sflag, size = 0x4, scoped, tag = 'scoped memory for tpu_custom_call.1']
    #allocation4 [shape = 's32[1]{0}', space=sflag, size = 0x4, scoped, tag = 'scoped memory for tpu_custom_call.1']
    #allocation5 [shape = 'u8[135168]{0}', space=vmem, size = 0x21000, scoped, tag = 'input window, operand 2, single buffered']
    #allocation6 [shape = 's32[1]{0}', space=sflag, size = 0x4, scoped, tag = 'scoped memory for tpu_custom_call.1']
    #allocation7 [shape = 'u8[512]{0}', space=vmem, size = 0x400, scoped, tag = 'output window, operand 0, single buffered']
    %8 = vsyncpa [#allocation3], 0
    %9 = vsyncpa [#allocation6], 0
    %10 = vsyncpa [#allocation4], 0
    // Predicated region
    $region2: #{tpu_custom_call.1} parent=1 // pred_check
      _
    $region3: #{tpu_custom_call.1} parent=1 // pred_check_branch
      %12 = sbr.rel (0) target = $region5
    $region4: #{tpu_custom_call.1} parent=1 // pred_region
      %s14 = ssub.s32 128, 128
      %15 = vsyncadd [#allocation3], %s14
      %s17 = sshll.u32 [#allocation2], 4
      %s18 = int_to_ptr.vmem [resolvable:$true] %s17
      %20 = dma.hbm_to_vmem [thread:$0]  %s0, 128, %s18, [#allocation3]
    $region5: #{tpu_custom_call.1} parent=1 // pred_fallthru
      _
    // Predicated region
    $region6: #{tpu_custom_call.1} parent=1 // pred_check
      _
    $region7: #{tpu_custom_call.1} parent=1 // pred_check_branch
      %22 = sbr.rel (0) target = $region9
    $region8: #{tpu_custom_call.1} parent=1 // pred_region
      _
    $region9: #{tpu_custom_call.1} parent=1 // pred_fallthru
      _
    // Predicated region
    $region10: #{tpu_custom_call.1} parent=1 // pred_check
      _
    $region11: #{tpu_custom_call.1} parent=1 // pred_check_branch
      %24 = sbr.rel (0) target = $region13
    $region12: #{tpu_custom_call.1} parent=1 // pred_region
      %s26 = ssub.s32 4224, 4224
      %27 = vsyncadd [#allocation6], %s26
      %s28 = sshll.u32 [#allocation5], 4
      %s29 = int_to_ptr.vmem [resolvable:$true] %s28
      %34 = dma.hbm_to_vmem [thread:$0]  %s2, 4224, %s29, [#allocation6], 128, 128, 8
    $region13: #{tpu_custom_call.1} parent=1 // pred_fallthru
      _
    // Predicated region
    $region14: #{tpu_custom_call.1} parent=1 // pred_check
      _
    $region15: #{tpu_custom_call.1} parent=1 // pred_check_branch
      %36 = sbr.rel (0) target = $region17
    $region16: #{tpu_custom_call.1} parent=1 // pred_region
      %37 = dma.done [#allocation3], 128
    $region17: #{tpu_custom_call.1} parent=1 // pred_fallthru
      _
    // Predicated region
    $region18: #{tpu_custom_call.1} parent=1 // pred_check
      _
    $region19: #{tpu_custom_call.1} parent=1 // pred_check_branch
      %39 = sbr.rel (0) target = $region21
    $region20: #{tpu_custom_call.1} parent=1 // pred_region
      %40 = dma.done [#allocation6], 4224
    $region21: #{tpu_custom_call.1} parent=1 // pred_fallthru
      _
    %v41 = vld [vmem:[#allocation5] sm:$0xff]
    %v42 = vld [vmem:[#allocation5 + $0x8] sm:$0xff]
    %v43 = vld [vmem:[#allocation5 + $0x10] sm:$0xff]
    %v44 = vld [vmem:[#allocation5 + $0x18] sm:$0xff]
    %v45 = vld [vmem:[#allocation5 + $0x20] sm:$0xff]
    %v46 = vld [vmem:[#allocation5 + $0x28] sm:$0xff]
    %v47 = vld [vmem:[#allocation5 + $0x30] sm:$0xff]
    %v48 = vld [vmem:[#allocation5 + $0x38] sm:$0xff]
    %v49 = vld [vmem:[#allocation5 + $0x40] sm:$0xff]
    %v50 = vld [vmem:[#allocation5 + $0x48] sm:$0xff]
    %v51 = vld [vmem:[#allocation5 + $0x50] sm:$0xff]
    %v52 = vld [vmem:[#allocation5 + $0x58] sm:$0xff]
    %v53 = vld [vmem:[#allocation5 + $0x60] sm:$0xff]
    %v54 = vld [vmem:[#allocation5 + $0x68] sm:$0xff]
    %v55 = vld [vmem:[#allocation5 + $0x70] sm:$0xff]
    %v56 = vld [vmem:[#allocation5 + $0x78] sm:$0xff]
    %v57 = vld [vmem:[#allocation5 + $0x80] sm:$0xff]
    %v58 = vld [vmem:[#allocation5 + $0x88] sm:$0xff]
    %v59 = vld [vmem:[#allocation5 + $0x90] sm:$0xff]
    %v60 = vld [vmem:[#allocation5 + $0x98] sm:$0xff]
    %v61 = vld [vmem:[#allocation5 + $0xa0] sm:$0xff]
    %v62 = vld [vmem:[#allocation5 + $0xa8] sm:$0xff]
    %v63 = vld [vmem:[#allocation5 + $0xb0] sm:$0xff]
    %v64 = vld [vmem:[#allocation5 + $0xb8] sm:$0xff]
    %v65 = vld [vmem:[#allocation5 + $0xc0] sm:$0xff]
    %v66 = vld [vmem:[#allocation5 + $0xc8] sm:$0xff]
    %v67 = vld [vmem:[#allocation5 + $0xd0] sm:$0xff]
    %v68 = vld [vmem:[#allocation5 + $0xd8] sm:$0xff]
    %v69 = vld [vmem:[#allocation5 + $0xe0] sm:$0xff]
    %v70 = vld [vmem:[#allocation5 + $0xe8] sm:$0x1]
    %v71 = vld [vmem:[#allocation5 + $0xf0] sm:$0x1]
    %v72 = vld [vmem:[#allocation5 + $0xf8] sm:$0x1]
    %v73 = vld [vmem:[#allocation5 + $0x100] sm:$0x1]
    %v74 = vld [vmem:[#allocation2] sm:$0xff]
    %v75 = vlaneseq
    %v76 = vshrl.u32 %v75, 7
    %v77 = vsub.s32 0, %v76
    %v78 = vrot.slane %v70, %v77
    %vm79 = vcmask 261120
    %v81 = vsel %vm79, %v74, 0
    %83 = vmatprep.subr.mxu0 0.0
    %84 = vmatpush1.msra.mxu0 %v41
    %85 = vmatprep.subr.mxu0 0.0
    %86 = vmatpush1.msra.mxu0 %v42
    %87 = vmatprep.subr.mxu0 0.0
    %88 = vmatpush1.msra.mxu0 %v43
    %89 = vmatprep.subr.mxu0 0.0
    %90 = vmatpush1.msra.mxu0 %v44
    %91 = vmatprep.subr.mxu0 0.0
    %92 = vmatpush1.msra.mxu0 0.0
    %93 = vmatprep.subr.mxu0 0.0
    %94 = vmatpush1.msra.mxu0 0.0
    %95 = vmatprep.subr.mxu0 0.0
    %96 = vmatpush1.msra.mxu0 0.0
    %97 = vmatprep.subr.mxu0 0.0
    %98 = vmatpush1.msra.mxu0 0.0
    %99 = vmatprep.subr.mxu0 0.0
    %100 = vmatpush1.msra.mxu0 0.0
    %101 = vmatprep.subr.mxu0 0.0
    %102 = vmatpush1.msra.mxu0 0.0
    %103 = vmatprep.subr.mxu0 0.0
    %104 = vmatpush1.msra.mxu0 0.0
    %105 = vmatprep.subr.mxu0 0.0
    %106 = vmatpush1.msra.mxu0 0.0
    %107 = vmatprep.subr.mxu0 0.0
    %108 = vmatpush1.msra.mxu0 0.0
    %109 = vmatprep.subr.mxu0 0.0
    %110 = vmatpush1.msra.mxu0 0.0
    %111 = vmatprep.subr.mxu0 0.0
    %112 = vmatpush1.msra.mxu0 0.0
    %113 = vmatprep.subr.mxu0 0.0
    %114 = vmatpush1.msra.mxu0 0.0
    %115 = vmatprep.subr.mxu0 0.0
    %116 = vmatpush1.msra.mxu0 0.0
    %117 = vmatprep.subr.mxu0 0.0
    %118 = vmatpush1.msra.mxu0 0.0
    %119 = vmatprep.subr.mxu0 0.0
    %120 = vmatpush1.msra.mxu0 0.0
    %121 = vmatprep.subr.mxu0 0.0
    %122 = vmatpush1.msra.mxu0 0.0
    %123 = vmatprep.subr.mxu0 0.0
    %124 = vmatpush1.msra.mxu0 0.0
    %125 = vmatprep.subr.mxu0 0.0
    %126 = vmatpush1.msra.mxu0 0.0
    %127 = vmatprep.subr.mxu0 0.0
    %128 = vmatpush1.msra.mxu0 0.0
    %129 = vmatprep.subr.mxu0 0.0
    %130 = vmatpush1.msra.mxu0 0.0
    %131 = vmatprep.subr.mxu0 0.0
    %132 = vmatpush1.msra.mxu0 0.0
    %133 = vmatprep.subr.mxu0 0.0
    %134 = vmatpush1.msra.mxu0 0.0
    %135 = vmatprep.subr.mxu0 0.0
    %136 = vmatpush1.msra.mxu0 0.0
    %137 = vmatprep.subr.mxu0 0.0
    %138 = vmatpush1.msra.mxu0 0.0
    %139 = vmatprep.subr.mxu0 0.0
    %140 = vmatpush1.msra.mxu0 0.0
    %141 = vmatprep.subr.mxu0 0.0
    %142 = vmatpush1.msra.mxu0 0.0
    %143 = vmatprep.subr.mxu0 0.0
    %144 = vmatpush1.msra.mxu0 0.0
    %145 = vmatprep.subr.mxu0 0.0
    %146 = vmatpush1.msra.mxu0 0.0
    %147 = vmatprep.mubr.f32.mxu0 0.0
    %148 = vmatmul.mubr.f32.gmra.mrb[0].mxu0 %v81
    %v149 = vpop.f32.mrb[0].mxu0
    %v150 = vadd.f32 %v78, %v149
    %v151 = vpop.f32.mrb[0].mxu0
    %152 = vdwg.mxu0
    %v154 = vsel %vm79, 0.0, 0
    %156 = vmatprep.subr.mxu0 0.0
    %157 = vmatpush1.msra.mxu0 %v45
    %158 = vmatprep.subr.mxu0 0.0
    %159 = vmatpush1.msra.mxu0 %v46
    %160 = vmatprep.subr.mxu0 0.0
    %161 = vmatpush1.msra.mxu0 %v47
    %162 = vmatprep.subr.mxu0 0.0
    %163 = vmatpush1.msra.mxu0 %v48
    %164 = vmatprep.subr.mxu0 0.0
    %165 = vmatpush1.msra.mxu0 0.0
    %166 = vmatprep.subr.mxu0 0.0
    %167 = vmatpush1.msra.mxu0 0.0
    %168 = vmatprep.subr.mxu0 0.0
    %169 = vmatpush1.msra.mxu0 0.0
    %170 = vmatprep.subr.mxu0 0.0
    %171 = vmatpush1.msra.mxu0 0.0
    %172 = vmatprep.subr.mxu0 0.0
    %173 = vmatpush1.msra.mxu0 0.0
    %174 = vmatprep.subr.mxu0 0.0
    %175 = vmatpush1.msra.mxu0 0.0
    %176 = vmatprep.subr.mxu0 0.0
    %177 = vmatpush1.msra.mxu0 0.0
    %178 = vmatprep.subr.mxu0 0.0
    %179 = vmatpush1.msra.mxu0 0.0
    %180 = vmatprep.subr.mxu0 0.0
    %181 = vmatpush1.msra.mxu0 0.0
    %182 = vmatprep.subr.mxu0 0.0
    %183 = vmatpush1.msra.mxu0 0.0
    %184 = vmatprep.subr.mxu0 0.0
    %185 = vmatpush1.msra.mxu0 0.0
    %186 = vmatprep.subr.mxu0 0.0
    %187 = vmatpush1.msra.mxu0 0.0
    %188 = vmatprep.subr.mxu0 0.0
    %189 = vmatpush1.msra.mxu0 0.0
    %190 = vmatprep.subr.mxu0 0.0
    %191 = vmatpush1.msra.mxu0 0.0
    %192 = vmatprep.subr.mxu0 0.0
    %193 = vmatpush1.msra.mxu0 0.0
    %194 = vmatprep.subr.mxu0 0.0
    %195 = vmatpush1.msra.mxu0 0.0
    %196 = vmatprep.subr.mxu0 0.0
    %197 = vmatpush1.msra.mxu0 0.0
    %198 = vmatprep.subr.mxu0 0.0
    %199 = vmatpush1.msra.mxu0 0.0
    %200 = vmatprep.subr.mxu0 0.0
    %201 = vmatpush1.msra.mxu0 0.0
    %202 = vmatprep.subr.mxu0 0.0
    %203 = vmatpush1.msra.mxu0 0.0
    %204 = vmatprep.subr.mxu0 0.0
    %205 = vmatpush1.msra.mxu0 0.0
    %206 = vmatprep.subr.mxu0 0.0
    %207 = vmatpush1.msra.mxu0 0.0
    %208 = vmatprep.subr.mxu0 0.0
    %209 = vmatpush1.msra.mxu0 0.0
    %210 = vmatprep.subr.mxu0 0.0
    %211 = vmatpush1.msra.mxu0 0.0
    %212 = vmatprep.subr.mxu0 0.0
    %213 = vmatpush1.msra.mxu0 0.0
    %214 = vmatprep.subr.mxu0 0.0
    %215 = vmatpush1.msra.mxu0 0.0
    %216 = vmatprep.subr.mxu0 0.0
    %217 = vmatpush1.msra.mxu0 0.0
    %218 = vmatprep.subr.mxu0 0.0
    %219 = vmatpush1.msra.mxu0 0.0
    %220 = vmatprep.mubr.f32.mxu0 0.0
    %221 = vmatmul.mubr.f32.gmra.mrb[0].mxu0 %v154
    %v222 = vpop.f32.mrb[0].mxu0
    %v223 = vadd.f32 0.0, %v222
    %v224 = vpop.f32.mrb[0].mxu0
    %225 = vdwg.mxu0
    %v226 = vadd.f32 %v150, %v223
    %v227 = vxor.u32 %v226, 2147483648
    %v228 = vmul.f32 %v227, 1.442695
    %v229 = vpow.pop %v228
    %v230 = vadd.f32 %v229, 1.0
    %v231 = vrcp.pop %v230
    %v232 = vmul.f32 1.0, %v231
    %v233 = vtanh.pop %v226
    %v234 = vmul.f32 %v232, 0.0
    %236 = vrot.lane.b32.xlu0 %v233, 64
    %v237 = vpop.permute.xlu0 %236
    %v239 = vmul.f32 %v232, %v237
    %241 = vrot.lane.b32.xlu0 %v239, 32
    %v242 = vpop.permute.xlu0 %241
    %v244 = vadd.f32 %v234, %v242
    %v245 = vtanh.pop %v244
    %247 = vrot.lane.b32.xlu0 %v245, 64
    %v248 = vpop.permute.xlu0 %247
    %v250 = vmul.f32 %v232, %v248
    %252 = vrot.lane.b32.xlu0 %v250, 32
    %v253 = vpop.permute.xlu0 %252
    %v254 = vsel %vm79, %v253, 0
    %256 = vmatprep.subr.mxu0 0.0
    %257 = vmatpush1.msra.mxu0 %v45
    %258 = vmatprep.subr.mxu0 0.0
    %259 = vmatpush1.msra.mxu0 %v46
    %260 = vmatprep.subr.mxu0 0.0
    %261 = vmatpush1.msra.mxu0 %v47
    %262 = vmatprep.subr.mxu0 0.0
    %263 = vmatpush1.msra.mxu0 %v48
    %264 = vmatprep.subr.mxu0 0.0
    %265 = vmatpush1.msra.mxu0 0.0
    %266 = vmatprep.subr.mxu0 0.0
    %267 = vmatpush1.msra.mxu0 0.0
    %268 = vmatprep.subr.mxu0 0.0
    %269 = vmatpush1.msra.mxu0 0.0
    %270 = vmatprep.subr.mxu0 0.0
    %271 = vmatpush1.msra.mxu0 0.0
    %272 = vmatprep.subr.mxu0 0.0
    %273 = vmatpush1.msra.mxu0 0.0
    %274 = vmatprep.subr.mxu0 0.0
    %275 = vmatpush1.msra.mxu0 0.0
    %276 = vmatprep.subr.mxu0 0.0
    %277 = vmatpush1.msra.mxu0 0.0
    %278 = vmatprep.subr.mxu0 0.0
    %279 = vmatpush1.msra.mxu0 0.0
    %280 = vmatprep.subr.mxu0 0.0
    %281 = vmatpush1.msra.mxu0 0.0
    %282 = vmatprep.subr.mxu0 0.0
    %283 = vmatpush1.msra.mxu0 0.0
    %284 = vmatprep.subr.mxu0 0.0
    %285 = vmatpush1.msra.mxu0 0.0
    %286 = vmatprep.subr.mxu0 0.0
    %287 = vmatpush1.msra.mxu0 0.0
    %288 = vmatprep.subr.mxu0 0.0
    %289 = vmatpush1.msra.mxu0 0.0
    %290 = vmatprep.subr.mxu0 0.0
    %291 = vmatpush1.msra.mxu0 0.0
    %292 = vmatprep.subr.mxu0 0.0
    %293 = vmatpush1.msra.mxu0 0.0
    %294 = vmatprep.subr.mxu0 0.0
    %295 = vmatpush1.msra.mxu0 0.0
    %296 = vmatprep.subr.mxu0 0.0
    %297 = vmatpush1.msra.mxu0 0.0
    %298 = vmatprep.subr.mxu0 0.0
    %299 = vmatpush1.msra.mxu0 0.0
    %300 = vmatprep.subr.mxu0 0.0
    %301 = vmatpush1.msra.mxu0 0.0
    %302 = vmatprep.subr.mxu0 0.0
    %303 = vmatpush1.msra.mxu0 0.0
    %304 = vmatprep.subr.mxu0 0.0
    %305 = vmatpush1.msra.mxu0 0.0
    %306 = vmatprep.subr.mxu0 0.0
    %307 = vmatpush1.msra.mxu0 0.0
    %308 = vmatprep.subr.mxu0 0.0
    %309 = vmatpush1.msra.mxu0 0.0
    %310 = vmatprep.subr.mxu0 0.0
    %311 = vmatpush1.msra.mxu0 0.0
    %312 = vmatprep.subr.mxu0 0.0
    %313 = vmatpush1.msra.mxu0 0.0
    %314 = vmatprep.subr.mxu0 0.0
    %315 = vmatpush1.msra.mxu0 0.0
    %316 = vmatprep.subr.mxu0 0.0
    %317 = vmatpush1.msra.mxu0 0.0
    %318 = vmatprep.subr.mxu0 0.0
    %319 = vmatpush1.msra.mxu0 0.0
    %320 = vmatprep.mubr.f32.mxu0 0.0
    %321 = vmatmul.mubr.f32.gmra.mrb[0].mxu0 %v254
    %v322 = vpop.f32.mrb[0].mxu0
    %v323 = vadd.f32 0.0, %v322
    %v324 = vpop.f32.mrb[0].mxu0
    %325 = vdwg.mxu0
    %v327 = vrot.slane %v323, 7
    %v329 = vadd.f32 %v150, %v327
    %v330 = vxor.u32 %v329, 2147483648
    %v331 = vmul.f32 %v330, 1.442695
    %v332 = vpow.pop %v331
    %v333 = vadd.f32 %v332, 1.0
    %v334 = vrcp.pop %v333
    %v335 = vmul.f32 1.0, %v334
    %v336 = vtanh.pop %v329
    %v338 = vrot.slane %v244, 7
    %v340 = vmul.f32 %v335, %v338
    %342 = vrot.lane.b32.xlu0 %v336, 64
    %v343 = vpop.permute.xlu0 %342
    %v345 = vmul.f32 %v335, %v343
    %347 = vrot.lane.b32.xlu0 %v345, 32
    %v348 = vpop.permute.xlu0 %347
    %v350 = vadd.f32 %v340, %v348
    %v351 = vtanh.pop %v350
    %353 = vrot.lane.b32.xlu0 %v351, 64
    %v354 = vpop.permute.xlu0 %353
    %v356 = vmul.f32 %v335, %v354
    %v358 = vrot.slane %v356, 1
    %359 = vrot.lane.b32.xlu0 %v358, 32
    %v360 = vpop.permute.xlu0 %359
    %v361 = vsel %vm79, %v360, 0
    %363 = vmatprep.subr.mxu0 0.0
    %364 = vmatpush1.msra.mxu0 %v45
    %365 = vmatprep.subr.mxu0 0.0
    %366 = vmatpush1.msra.mxu0 %v46
    %367 = vmatprep.subr.mxu0 0.0
    %368 = vmatpush1.msra.mxu0 %v47
    %369 = vmatprep.subr.mxu0 0.0
    %370 = vmatpush1.msra.mxu0 %v48
    %371 = vmatprep.subr.mxu0 0.0
    %372 = vmatpush1.msra.mxu0 0.0
    %373 = vmatprep.subr.mxu0 0.0
    %374 = vmatpush1.msra.mxu0 0.0
    %375 = vmatprep.subr.mxu0 0.0
    %376 = vmatpush1.msra.mxu0 0.0
    %377 = vmatprep.subr.mxu0 0.0
    %378 = vmatpush1.msra.mxu0 0.0
    %379 = vmatprep.subr.mxu0 0.0
    %380 = vmatpush1.msra.mxu0 0.0
    %381 = vmatprep.subr.mxu0 0.0
    %382 = vmatpush1.msra.mxu0 0.0
    %383 = vmatprep.subr.mxu0 0.0
    %384 = vmatpush1.msra.mxu0 0.0
    %385 = vmatprep.subr.mxu0 0.0
    %386 = vmatpush1.msra.mxu0 0.0
    %387 = vmatprep.subr.mxu0 0.0
    %388 = vmatpush1.msra.mxu0 0.0
    %389 = vmatprep.subr.mxu0 0.0
    %390 = vmatpush1.msra.mxu0 0.0
    %391 = vmatprep.subr.mxu0 0.0
    %392 = vmatpush1.msra.mxu0 0.0
    %393 = vmatprep.subr.mxu0 0.0
    %394 = vmatpush1.msra.mxu0 0.0
    %395 = vmatprep.subr.mxu0 0.0
    %396 = vmatpush1.msra.mxu0 0.0
    %397 = vmatprep.subr.mxu0 0.0
    %398 = vmatpush1.msra.mxu0 0.0
    %399 = vmatprep.subr.mxu0 0.0
    %400 = vmatpush1.msra.mxu0 0.0
    %401 = vmatprep.subr.mxu0 0.0
    %402 = vmatpush1.msra.mxu0 0.0
    %403 = vmatprep.subr.mxu0 0.0
    %404 = vmatpush1.msra.mxu0 0.0
    %405 = vmatprep.subr.mxu0 0.0
    %406 = vmatpush1.msra.mxu0 0.0
    %407 = vmatprep.subr.mxu0 0.0
    %408 = vmatpush1.msra.mxu0 0.0
    %409 = vmatprep.subr.mxu0 0.0
    %410 = vmatpush1.msra.mxu0 0.0
    %411 = vmatprep.subr.mxu0 0.0
    %412 = vmatpush1.msra.mxu0 0.0
    %413 = vmatprep.subr.mxu0 0.0
    %414 = vmatpush1.msra.mxu0 0.0
    %415 = vmatprep.subr.mxu0 0.0
    %416 = vmatpush1.msra.mxu0 0.0
    %417 = vmatprep.subr.mxu0 0.0
    %418 = vmatpush1.msra.mxu0 0.0
    %419 = vmatprep.subr.mxu0 0.0
    %420 = vmatpush1.msra.mxu0 0.0
    %421 = vmatprep.subr.mxu0 0.0
    %422 = vmatpush1.msra.mxu0 0.0
    %423 = vmatprep.subr.mxu0 0.0
    %424 = vmatpush1.msra.mxu0 0.0
    %425 = vmatprep.subr.mxu0 0.0
    %426 = vmatpush1.msra.mxu0 0.0
    %427 = vmatprep.mubr.f32.mxu0 0.0
    %428 = vmatmul.mubr.f32.gmra.mrb[0].mxu0 %v361
    %v429 = vpop.f32.mrb[0].mxu0
    %v430 = vadd.f32 0.0, %v429
    %v431 = vpop.f32.mrb[0].mxu0
    %432 = vdwg.mxu0
    %v434 = vrot.slane %v430, 6
    %v436 = vadd.f32 %v150, %v434
    %v437 = vxor.u32 %v436, 2147483648
    %v438 = vmul.f32 %v437, 1.442695
    %v439 = vpow.pop %v438
    %v440 = vadd.f32 %v439, 1.0
    %v441 = vrcp.pop %v440
    %v442 = vmul.f32 1.0, %v441
    %v443 = vtanh.pop %v436
    %v445 = vrot.slane %v350, 7
    %v447 = vmul.f32 %v442, %v445
    %449 = vrot.lane.b32.xlu0 %v443, 64
    %v450 = vpop.permute.xlu0 %449
    %v452 = vmul.f32 %v442, %v450
    %454 = vrot.lane.b32.xlu0 %v452, 32
    %v455 = vpop.permute.xlu0 %454
    %v457 = vadd.f32 %v447, %v455
    %v458 = vtanh.pop %v457
    %460 = vrot.lane.b32.xlu0 %v458, 64
    %v461 = vpop.permute.xlu0 %460
    %v463 = vmul.f32 %v442, %v461
    %v465 = vrot.slane %v463, 2
    %466 = vrot.lane.b32.xlu0 %v465, 32
    %v467 = vpop.permute.xlu0 %466
    %v468 = vsel %vm79, %v467, 0
    %470 = vmatprep.subr.mxu0 0.0
    %471 = vmatpush1.msra.mxu0 %v45
    %472 = vmatprep.subr.mxu0 0.0
    %473 = vmatpush1.msra.mxu0 %v46
    %474 = vmatprep.subr.mxu0 0.0
    %475 = vmatpush1.msra.mxu0 %v47
    %476 = vmatprep.subr.mxu0 0.0
    %477 = vmatpush1.msra.mxu0 %v48
    %478 = vmatprep.subr.mxu0 0.0
    %479 = vmatpush1.msra.mxu0 0.0
    %480 = vmatprep.subr.mxu0 0.0
    %481 = vmatpush1.msra.mxu0 0.0
    %482 = vmatprep.subr.mxu0 0.0
    %483 = vmatpush1.msra.mxu0 0.0
    %484 = vmatprep.subr.mxu0 0.0
    %485 = vmatpush1.msra.mxu0 0.0
    %486 = vmatprep.subr.mxu0 0.0
    %487 = vmatpush1.msra.mxu0 0.0
    %488 = vmatprep.subr.mxu0 0.0
    %489 = vmatpush1.msra.mxu0 0.0
    %490 = vmatprep.subr.mxu0 0.0
    %491 = vmatpush1.msra.mxu0 0.0
    %492 = vmatprep.subr.mxu0 0.0
    %493 = vmatpush1.msra.mxu0 0.0
    %494 = vmatprep.subr.mxu0 0.0
    %495 = vmatpush1.msra.mxu0 0.0
    %496 = vmatprep.subr.mxu0 0.0
    %497 = vmatpush1.msra.mxu0 0.0
    %498 = vmatprep.subr.mxu0 0.0
    %499 = vmatpush1.msra.mxu0 0.0
    %500 = vmatprep.subr.mxu0 0.0
    %501 = vmatpush1.msra.mxu0 0.0
    %502 = vmatprep.subr.mxu0 0.0
    %503 = vmatpush1.msra.mxu0 0.0
    %504 = vmatprep.subr.mxu0 0.0
    %505 = vmatpush1.msra.mxu0 0.0
    %506 = vmatprep.subr.mxu0 0.0
    %507 = vmatpush1.msra.mxu0 0.0
    %508 = vmatprep.subr.mxu0 0.0
    %509 = vmatpush1.msra.mxu0 0.0
    %510 = vmatprep.subr.mxu0 0.0
    %511 = vmatpush1.msra.mxu0 0.0
    %512 = vmatprep.subr.mxu0 0.0
    %513 = vmatpush1.msra.mxu0 0.0
    %514 = vmatprep.subr.mxu0 0.0
    %515 = vmatpush1.msra.mxu0 0.0
    %516 = vmatprep.subr.mxu0 0.0
    %517 = vmatpush1.msra.mxu0 0.0
    %518 = vmatprep.subr.mxu0 0.0
    %519 = vmatpush1.msra.mxu0 0.0
    %520 = vmatprep.subr.mxu0 0.0
    %521 = vmatpush1.msra.mxu0 0.0
    %522 = vmatprep.subr.mxu0 0.0
    %523 = vmatpush1.msra.mxu0 0.0
    %524 = vmatprep.subr.mxu0 0.0
    %525 = vmatpush1.msra.mxu0 0.0
    %526 = vmatprep.subr.mxu0 0.0
    %527 = vmatpush1.msra.mxu0 0.0
    %528 = vmatprep.subr.mxu0 0.0
    %529 = vmatpush1.msra.mxu0 0.0
    %530 = vmatprep.subr.mxu0 0.0
    %531 = vmatpush1.msra.mxu0 0.0
    %532 = vmatprep.subr.mxu0 0.0
    %533 = vmatpush1.msra.mxu0 0.0
    %534 = vmatprep.mubr.f32.mxu0 0.0
    %535 = vmatmul.mubr.f32.gmra.mrb[0].mxu0 %v468
    %v536 = vpop.f32.mrb[0].mxu0
    %v537 = vadd.f32 0.0, %v536
    %v538 = vpop.f32.mrb[0].mxu0
    %539 = vdwg.mxu0
    %v541 = vrot.slane %v537, 5
    %v543 = vadd.f32 %v150, %v541
    %v544 = vxor.u32 %v543, 2147483648
    %v545 = vmul.f32 %v544, 1.442695
    %v546 = vpow.pop %v545
    %v547 = vadd.f32 %v546, 1.0
    %v548 = vrcp.pop %v547
    %v549 = vmul.f32 1.0, %v548
    %v550 = vtanh.pop %v543
    %v552 = vrot.slane %v457, 7
    %v554 = vmul.f32 %v549, %v552
    %556 = vrot.lane.b32.xlu0 %v550, 64
    %v557 = vpop.permute.xlu0 %556
    %v559 = vmul.f32 %v549, %v557
    %561 = vrot.lane.b32.xlu0 %v559, 32
    %v562 = vpop.permute.xlu0 %561
    %v564 = vadd.f32 %v554, %v562
    %v565 = vtanh.pop %v564
    %567 = vrot.lane.b32.xlu0 %v565, 64
    %v568 = vpop.permute.xlu0 %567
    %v570 = vmul.f32 %v549, %v568
    %v572 = vrot.slane %v570, 3
    %573 = vrot.lane.b32.xlu0 %v572, 32
    %v574 = vpop.permute.xlu0 %573
    %v575 = vsel %vm79, %v574, 0
    %577 = vmatprep.subr.mxu0 0.0
    %578 = vmatpush1.msra.mxu0 %v45
    %579 = vmatprep.subr.mxu0 0.0
    %580 = vmatpush1.msra.mxu0 %v46
    %581 = vmatprep.subr.mxu0 0.0
    %582 = vmatpush1.msra.mxu0 %v47
    %583 = vmatprep.subr.mxu0 0.0
    %584 = vmatpush1.msra.mxu0 %v48
    %585 = vmatprep.subr.mxu0 0.0
    %586 = vmatpush1.msra.mxu0 0.0
    %587 = vmatprep.subr.mxu0 0.0
    %588 = vmatpush1.msra.mxu0 0.0
    %589 = vmatprep.subr.mxu0 0.0
    %590 = vmatpush1.msra.mxu0 0.0
    %591 = vmatprep.subr.mxu0 0.0
    %592 = vmatpush1.msra.mxu0 0.0
    %593 = vmatprep.subr.mxu0 0.0
    %594 = vmatpush1.msra.mxu0 0.0
    %595 = vmatprep.subr.mxu0 0.0
    %596 = vmatpush1.msra.mxu0 0.0
    %597 = vmatprep.subr.mxu0 0.0
    %598 = vmatpush1.msra.mxu0 0.0
    %599 = vmatprep.subr.mxu0 0.0
    %600 = vmatpush1.msra.mxu0 0.0
    %601 = vmatprep.subr.mxu0 0.0
    %602 = vmatpush1.msra.mxu0 0.0
    %603 = vmatprep.subr.mxu0 0.0
    %604 = vmatpush1.msra.mxu0 0.0
    %605 = vmatprep.subr.mxu0 0.0
    %606 = vmatpush1.msra.mxu0 0.0
    %607 = vmatprep.subr.mxu0 0.0
    %608 = vmatpush1.msra.mxu0 0.0
    %609 = vmatprep.subr.mxu0 0.0
    %610 = vmatpush1.msra.mxu0 0.0
    %611 = vmatprep.subr.mxu0 0.0
    %612 = vmatpush1.msra.mxu0 0.0
    %613 = vmatprep.subr.mxu0 0.0
    %614 = vmatpush1.msra.mxu0 0.0
    %615 = vmatprep.subr.mxu0 0.0
    %616 = vmatpush1.msra.mxu0 0.0
    %617 = vmatprep.subr.mxu0 0.0
    %618 = vmatpush1.msra.mxu0 0.0
    %619 = vmatprep.subr.mxu0 0.0
    %620 = vmatpush1.msra.mxu0 0.0
    %621 = vmatprep.subr.mxu0 0.0
    %622 = vmatpush1.msra.mxu0 0.0
    %623 = vmatprep.subr.mxu0 0.0
    %624 = vmatpush1.msra.mxu0 0.0
    %625 = vmatprep.subr.mxu0 0.0
    %626 = vmatpush1.msra.mxu0 0.0
    %627 = vmatprep.subr.mxu0 0.0
    %628 = vmatpush1.msra.mxu0 0.0
    %629 = vmatprep.subr.mxu0 0.0
    %630 = vmatpush1.msra.mxu0 0.0
    %631 = vmatprep.subr.mxu0 0.0
    %632 = vmatpush1.msra.mxu0 0.0
    %633 = vmatprep.subr.mxu0 0.0
    %634 = vmatpush1.msra.mxu0 0.0
    %635 = vmatprep.subr.mxu0 0.0
    %636 = vmatpush1.msra.mxu0 0.0
    %637 = vmatprep.subr.mxu0 0.0
    %638 = vmatpush1.msra.mxu0 0.0
    %639 = vmatprep.subr.mxu0 0.0
    %640 = vmatpush1.msra.mxu0 0.0
    %641 = vmatprep.mubr.f32.mxu0 0.0
    %642 = vmatmul.mubr.f32.gmra.mrb[0].mxu0 %v575
    %v643 = vpop.f32.mrb[0].mxu0
    %v644 = vadd.f32 0.0, %v643
    %v645 = vpop.f32.mrb[0].mxu0
    %646 = vdwg.mxu0
    %v648 = vrot.slane %v644, 4
    %v650 = vadd.f32 %v150, %v648
    %v651 = vxor.u32 %v650, 2147483648
    %v652 = vmul.f32 %v651, 1.442695
    %v653 = vpow.pop %v652
    %v654 = vadd.f32 %v653, 1.0
    %v655 = vrcp.pop %v654
    %v656 = vmul.f32 1.0, %v655
    %v657 = vtanh.pop %v650
    %v659 = vrot.slane %v564, 7
    %v661 = vmul.f32 %v656, %v659
    %663 = vrot.lane.b32.xlu0 %v657, 64
    %v664 = vpop.permute.xlu0 %663
    %v666 = vmul.f32 %v656, %v664
    %668 = vrot.lane.b32.xlu0 %v666, 32
    %v669 = vpop.permute.xlu0 %668
    %v671 = vadd.f32 %v661, %v669
    %v672 = vtanh.pop %v671
    %674 = vrot.lane.b32.xlu0 %v672, 64
    %v675 = vpop.permute.xlu0 %674
    %v677 = vmul.f32 %v656, %v675
    %v679 = vrot.slane %v677, 4
    %680 = vrot.lane.b32.xlu0 %v679, 32
    %v681 = vpop.permute.xlu0 %680
    %v682 = vsel %vm79, %v681, 0
    %684 = vmatprep.subr.mxu0 0.0
    %685 = vmatpush1.msra.mxu0 %v45
    %686 = vmatprep.subr.mxu0 0.0
    %687 = vmatpush1.msra.mxu0 %v46
    %688 = vmatprep.subr.mxu0 0.0
    %689 = vmatpush1.msra.mxu0 %v47
    %690 = vmatprep.subr.mxu0 0.0
    %691 = vmatpush1.msra.mxu0 %v48
    %692 = vmatprep.subr.mxu0 0.0
    %693 = vmatpush1.msra.mxu0 0.0
    %694 = vmatprep.subr.mxu0 0.0
    %695 = vmatpush1.msra.mxu0 0.0
    %696 = vmatprep.subr.mxu0 0.0
    %697 = vmatpush1.msra.mxu0 0.0
    %698 = vmatprep.subr.mxu0 0.0
    %699 = vmatpush1.msra.mxu0 0.0
    %700 = vmatprep.subr.mxu0 0.0
    %701 = vmatpush1.msra.mxu0 0.0
    %702 = vmatprep.subr.mxu0 0.0
    %703 = vmatpush1.msra.mxu0 0.0
    %704 = vmatprep.subr.mxu0 0.0
    %705 = vmatpush1.msra.mxu0 0.0
    %706 = vmatprep.subr.mxu0 0.0
    %707 = vmatpush1.msra.mxu0 0.0
    %708 = vmatprep.subr.mxu0 0.0
    %709 = vmatpush1.msra.mxu0 0.0
    %710 = vmatprep.subr.mxu0 0.0
    %711 = vmatpush1.msra.mxu0 0.0
    %712 = vmatprep.subr.mxu0 0.0
    %713 = vmatpush1.msra.mxu0 0.0
    %714 = vmatprep.subr.mxu0 0.0
    %715 = vmatpush1.msra.mxu0 0.0
    %716 = vmatprep.subr.mxu0 0.0
    %717 = vmatpush1.msra.mxu0 0.0
    %718 = vmatprep.subr.mxu0 0.0
    %719 = vmatpush1.msra.mxu0 0.0
    %720 = vmatprep.subr.mxu0 0.0
    %721 = vmatpush1.msra.mxu0 0.0
    %722 = vmatprep.subr.mxu0 0.0
    %723 = vmatpush1.msra.mxu0 0.0
    %724 = vmatprep.subr.mxu0 0.0
    %725 = vmatpush1.msra.mxu0 0.0
    %726 = vmatprep.subr.mxu0 0.0
    %727 = vmatpush1.msra.mxu0 0.0
    %728 = vmatprep.subr.mxu0 0.0
    %729 = vmatpush1.msra.mxu0 0.0
    %730 = vmatprep.subr.mxu0 0.0
    %731 = vmatpush1.msra.mxu0 0.0
    %732 = vmatprep.subr.mxu0 0.0
    %733 = vmatpush1.msra.mxu0 0.0
    %734 = vmatprep.subr.mxu0 0.0
    %735 = vmatpush1.msra.mxu0 0.0
    %736 = vmatprep.subr.mxu0 0.0
    %737 = vmatpush1.msra.mxu0 0.0
    %738 = vmatprep.subr.mxu0 0.0
    %739 = vmatpush1.msra.mxu0 0.0
    %740 = vmatprep.subr.mxu0 0.0
    %741 = vmatpush1.msra.mxu0 0.0
    %742 = vmatprep.subr.mxu0 0.0
    %743 = vmatpush1.msra.mxu0 0.0
    %744 = vmatprep.subr.mxu0 0.0
    %745 = vmatpush1.msra.mxu0 0.0
    %746 = vmatprep.subr.mxu0 0.0
    %747 = vmatpush1.msra.mxu0 0.0
    %748 = vmatprep.mubr.f32.mxu0 0.0
    %749 = vmatmul.mubr.f32.gmra.mrb[0].mxu0 %v682
    %v750 = vpop.f32.mrb[0].mxu0
    %v751 = vadd.f32 0.0, %v750
    %v752 = vpop.f32.mrb[0].mxu0
    %753 = vdwg.mxu0
    %v755 = vrot.slane %v751, 3
    %v757 = vadd.f32 %v150, %v755
    %v758 = vxor.u32 %v757, 2147483648
    %v759 = vmul.f32 %v758, 1.442695
    %v760 = vpow.pop %v759
    %v761 = vadd.f32 %v760, 1.0
    %v762 = vrcp.pop %v761
    %v763 = vmul.f32 1.0, %v762
    %v764 = vtanh.pop %v757
    %v766 = vrot.slane %v671, 7
    %v768 = vmul.f32 %v763, %v766
    %770 = vrot.lane.b32.xlu0 %v764, 64
    %v771 = vpop.permute.xlu0 %770
    %v773 = vmul.f32 %v763, %v771
    %775 = vrot.lane.b32.xlu0 %v773, 32
    %v776 = vpop.permute.xlu0 %775
    %v778 = vadd.f32 %v768, %v776
    %v779 = vtanh.pop %v778
    %781 = vrot.lane.b32.xlu0 %v779, 64
    %v782 = vpop.permute.xlu0 %781
    %v784 = vmul.f32 %v763, %v782
    %v786 = vrot.slane %v784, 5
    %787 = vrot.lane.b32.xlu0 %v786, 32
    %v788 = vpop.permute.xlu0 %787
    %v789 = vsel %vm79, %v788, 0
    %791 = vmatprep.subr.mxu0 0.0
    %792 = vmatpush1.msra.mxu0 %v45
    %793 = vmatprep.subr.mxu0 0.0
    %794 = vmatpush1.msra.mxu0 %v46
    %795 = vmatprep.subr.mxu0 0.0
    %796 = vmatpush1.msra.mxu0 %v47
    %797 = vmatprep.subr.mxu0 0.0
    %798 = vmatpush1.msra.mxu0 %v48
    %799 = vmatprep.subr.mxu0 0.0
    %800 = vmatpush1.msra.mxu0 0.0
    %801 = vmatprep.subr.mxu0 0.0
    %802 = vmatpush1.msra.mxu0 0.0
    %803 = vmatprep.subr.mxu0 0.0
    %804 = vmatpush1.msra.mxu0 0.0
    %805 = vmatprep.subr.mxu0 0.0
    %806 = vmatpush1.msra.mxu0 0.0
    %807 = vmatprep.subr.mxu0 0.0
    %808 = vmatpush1.msra.mxu0 0.0
    %809 = vmatprep.subr.mxu0 0.0
    %810 = vmatpush1.msra.mxu0 0.0
    %811 = vmatprep.subr.mxu0 0.0
    %812 = vmatpush1.msra.mxu0 0.0
    %813 = vmatprep.subr.mxu0 0.0
    %814 = vmatpush1.msra.mxu0 0.0
    %815 = vmatprep.subr.mxu0 0.0
    %816 = vmatpush1.msra.mxu0 0.0
    %817 = vmatprep.subr.mxu0 0.0
    %818 = vmatpush1.msra.mxu0 0.0
    %819 = vmatprep.subr.mxu0 0.0
    %820 = vmatpush1.msra.mxu0 0.0
    %821 = vmatprep.subr.mxu0 0.0
    %822 = vmatpush1.msra.mxu0 0.0
    %823 = vmatprep.subr.mxu0 0.0
    %824 = vmatpush1.msra.mxu0 0.0
    %825 = vmatprep.subr.mxu0 0.0
    %826 = vmatpush1.msra.mxu0 0.0
    %827 = vmatprep.subr.mxu0 0.0
    %828 = vmatpush1.msra.mxu0 0.0
    %829 = vmatprep.subr.mxu0 0.0
    %830 = vmatpush1.msra.mxu0 0.0
    %831 = vmatprep.subr.mxu0 0.0
    %832 = vmatpush1.msra.mxu0 0.0
    %833 = vmatprep.subr.mxu0 0.0
    %834 = vmatpush1.msra.mxu0 0.0
    %835 = vmatprep.subr.mxu0 0.0
    %836 = vmatpush1.msra.mxu0 0.0
    %837 = vmatprep.subr.mxu0 0.0
    %838 = vmatpush1.msra.mxu0 0.0
    %839 = vmatprep.subr.mxu0 0.0
    %840 = vmatpush1.msra.mxu0 0.0
    %841 = vmatprep.subr.mxu0 0.0
    %842 = vmatpush1.msra.mxu0 0.0
    %843 = vmatprep.subr.mxu0 0.0
    %844 = vmatpush1.msra.mxu0 0.0
    %845 = vmatprep.subr.mxu0 0.0
    %846 = vmatpush1.msra.mxu0 0.0
    %847 = vmatprep.subr.mxu0 0.0
    %848 = vmatpush1.msra.mxu0 0.0
    %849 = vmatprep.subr.mxu0 0.0
    %850 = vmatpush1.msra.mxu0 0.0
    %851 = vmatprep.subr.mxu0 0.0
    %852 = vmatpush1.msra.mxu0 0.0
    %853 = vmatprep.subr.mxu0 0.0
    %854 = vmatpush1.msra.mxu0 0.0
    %855 = vmatprep.mubr.f32.mxu0 0.0
    %856 = vmatmul.mubr.f32.gmra.mrb[0].mxu0 %v789
    %v857 = vpop.f32.mrb[0].mxu0
    %v858 = vadd.f32 0.0, %v857
    %v859 = vpop.f32.mrb[0].mxu0
    %860 = vdwg.mxu0
    %v862 = vrot.slane %v858, 2
    %v864 = vadd.f32 %v150, %v862
    %v865 = vxor.u32 %v864, 2147483648
    %v866 = vmul.f32 %v865, 1.442695
    %v867 = vpow.pop %v866
    %v868 = vadd.f32 %v867, 1.0
    %v869 = vrcp.pop %v868
    %v870 = vmul.f32 1.0, %v869
    %v871 = vtanh.pop %v864
    %v873 = vrot.slane %v778, 7
    %v875 = vmul.f32 %v870, %v873
    %877 = vrot.lane.b32.xlu0 %v871, 64
    %v878 = vpop.permute.xlu0 %877
    %v880 = vmul.f32 %v870, %v878
    %882 = vrot.lane.b32.xlu0 %v880, 32
    %v883 = vpop.permute.xlu0 %882
    %v885 = vadd.f32 %v875, %v883
    %v886 = vtanh.pop %v885
    %888 = vrot.lane.b32.xlu0 %v886, 64
    %v889 = vpop.permute.xlu0 %888
    %v891 = vmul.f32 %v870, %v889
    %v893 = vrot.slane %v891, 6
    %894 = vrot.lane.b32.xlu0 %v893, 32
    %v895 = vpop.permute.xlu0 %894
    %v896 = vsel %vm79, %v895, 0
    %898 = vmatprep.subr.mxu0 0.0
    %899 = vmatpush1.msra.mxu0 %v45
    %900 = vmatprep.subr.mxu0 0.0
    %901 = vmatpush1.msra.mxu0 %v46
    %902 = vmatprep.subr.mxu0 0.0
    %903 = vmatpush1.msra.mxu0 %v47
    %904 = vmatprep.subr.mxu0 0.0
    %905 = vmatpush1.msra.mxu0 %v48
    %906 = vmatprep.subr.mxu0 0.0
    %907 = vmatpush1.msra.mxu0 0.0
    %908 = vmatprep.subr.mxu0 0.0
    %909 = vmatpush1.msra.mxu0 0.0
    %910 = vmatprep.subr.mxu0 0.0
    %911 = vmatpush1.msra.mxu0 0.0
    %912 = vmatprep.subr.mxu0 0.0
    %913 = vmatpush1.msra.mxu0 0.0
    %914 = vmatprep.subr.mxu0 0.0
    %915 = vmatpush1.msra.mxu0 0.0
    %916 = vmatprep.subr.mxu0 0.0
    %917 = vmatpush1.msra.mxu0 0.0
    %918 = vmatprep.subr.mxu0 0.0
    %919 = vmatpush1.msra.mxu0 0.0
    %920 = vmatprep.subr.mxu0 0.0
    %921 = vmatpush1.msra.mxu0 0.0
    %922 = vmatprep.subr.mxu0 0.0
    %923 = vmatpush1.msra.mxu0 0.0
    %924 = vmatprep.subr.mxu0 0.0
    %925 = vmatpush1.msra.mxu0 0.0
    %926 = vmatprep.subr.mxu0 0.0
    %927 = vmatpush1.msra.mxu0 0.0
    %928 = vmatprep.subr.mxu0 0.0
    %929 = vmatpush1.msra.mxu0 0.0
    %930 = vmatprep.subr.mxu0 0.0
    %931 = vmatpush1.msra.mxu0 0.0
    %932 = vmatprep.subr.mxu0 0.0
    %933 = vmatpush1.msra.mxu0 0.0
    %934 = vmatprep.subr.mxu0 0.0
    %935 = vmatpush1.msra.mxu0 0.0
    %936 = vmatprep.subr.mxu0 0.0
    %937 = vmatpush1.msra.mxu0 0.0
    %938 = vmatprep.subr.mxu0 0.0
    %939 = vmatpush1.msra.mxu0 0.0
    %940 = vmatprep.subr.mxu0 0.0
    %941 = vmatpush1.msra.mxu0 0.0
    %942 = vmatprep.subr.mxu0 0.0
    %943 = vmatpush1.msra.mxu0 0.0
    %944 = vmatprep.subr.mxu0 0.0
    %945 = vmatpush1.msra.mxu0 0.0
    %946 = vmatprep.subr.mxu0 0.0
    %947 = vmatpush1.msra.mxu0 0.0
    %948 = vmatprep.subr.mxu0 0.0
    %949 = vmatpush1.msra.mxu0 0.0
    %950 = vmatprep.subr.mxu0 0.0
    %951 = vmatpush1.msra.mxu0 0.0
    %952 = vmatprep.subr.mxu0 0.0
    %953 = vmatpush1.msra.mxu0 0.0
    %954 = vmatprep.subr.mxu0 0.0
    %955 = vmatpush1.msra.mxu0 0.0
    %956 = vmatprep.subr.mxu0 0.0
    %957 = vmatpush1.msra.mxu0 0.0
    %958 = vmatprep.subr.mxu0 0.0
    %959 = vmatpush1.msra.mxu0 0.0
    %960 = vmatprep.subr.mxu0 0.0
    %961 = vmatpush1.msra.mxu0 0.0
    %962 = vmatprep.mubr.f32.mxu0 0.0
    %963 = vmatmul.mubr.f32.gmra.mrb[0].mxu0 %v896
    %v964 = vpop.f32.mrb[0].mxu0
    %v965 = vadd.f32 0.0, %v964
    %v966 = vpop.f32.mrb[0].mxu0
    %967 = vdwg.mxu0
    %v969 = vrot.slane %v965, 1
    %v971 = vadd.f32 %v150, %v969
    %v972 = vxor.u32 %v971, 2147483648
    %v973 = vmul.f32 %v972, 1.442695
    %v974 = vpow.pop %v973
    %v975 = vadd.f32 %v974, 1.0
    %v976 = vrcp.pop %v975
    %v977 = vmul.f32 1.0, %v976
    %v978 = vtanh.pop %v971
    %v980 = vrot.slane %v885, 7
    %v982 = vmul.f32 %v977, %v980
    %984 = vrot.lane.b32.xlu0 %v978, 64
    %v985 = vpop.permute.xlu0 %984
    %v987 = vmul.f32 %v977, %v985
    %989 = vrot.lane.b32.xlu0 %v987, 32
    %v990 = vpop.permute.xlu0 %989
    %v992 = vadd.f32 %v982, %v990
    %v993 = vtanh.pop %v992
    %995 = vrot.lane.b32.xlu0 %v993, 64
    %v996 = vpop.permute.xlu0 %995
    %v998 = vmul.f32 %v977, %v996
    %v999 = vld [vmem:[%s1] sm:$0x1]
    %v1001 = vrot.slane %v998, 7
    %1002 = vrot.lane.b32.xlu0 %v1001, 32
    %v1003 = vpop.permute.xlu0 %1002
    %v1004 = vsel %vm79, %v1003, 0
    %1006 = vmatprep.subr.mxu0 0.0
    %1007 = vmatpush1.msra.mxu0 %v50
    %1008 = vmatprep.subr.mxu0 0.0
    %1009 = vmatpush1.msra.mxu0 %v51
    %1010 = vmatprep.subr.mxu0 0.0
    %1011 = vmatpush1.msra.mxu0 %v52
    %1012 = vmatprep.subr.mxu0 0.0
    %1013 = vmatpush1.msra.mxu0 %v53
    %1014 = vmatprep.subr.mxu0 0.0
    %1015 = vmatpush1.msra.mxu0 0.0
    %1016 = vmatprep.subr.mxu0 0.0
    %1017 = vmatpush1.msra.mxu0 0.0
    %1018 = vmatprep.subr.mxu0 0.0
    %1019 = vmatpush1.msra.mxu0 0.0
    %1020 = vmatprep.subr.mxu0 0.0
    %1021 = vmatpush1.msra.mxu0 0.0
    %1022 = vmatprep.subr.mxu0 0.0
    %1023 = vmatpush1.msra.mxu0 0.0
    %1024 = vmatprep.subr.mxu0 0.0
    %1025 = vmatpush1.msra.mxu0 0.0
    %1026 = vmatprep.subr.mxu0 0.0
    %1027 = vmatpush1.msra.mxu0 0.0
    %1028 = vmatprep.subr.mxu0 0.0
    %1029 = vmatpush1.msra.mxu0 0.0
    %1030 = vmatprep.subr.mxu0 0.0
    %1031 = vmatpush1.msra.mxu0 0.0
    %1032 = vmatprep.subr.mxu0 0.0
    %1033 = vmatpush1.msra.mxu0 0.0
    %1034 = vmatprep.subr.mxu0 0.0
    %1035 = vmatpush1.msra.mxu0 0.0
    %1036 = vmatprep.subr.mxu0 0.0
    %1037 = vmatpush1.msra.mxu0 0.0
    %1038 = vmatprep.subr.mxu0 0.0
    %1039 = vmatpush1.msra.mxu0 0.0
    %1040 = vmatprep.subr.mxu0 0.0
    %1041 = vmatpush1.msra.mxu0 0.0
    %1042 = vmatprep.subr.mxu0 0.0
    %1043 = vmatpush1.msra.mxu0 0.0
    %1044 = vmatprep.subr.mxu0 0.0
    %1045 = vmatpush1.msra.mxu0 0.0
    %1046 = vmatprep.subr.mxu0 0.0
    %1047 = vmatpush1.msra.mxu0 0.0
    %1048 = vmatprep.subr.mxu0 0.0
    %1049 = vmatpush1.msra.mxu0 0.0
    %1050 = vmatprep.subr.mxu0 0.0
    %1051 = vmatpush1.msra.mxu0 0.0
    %1052 = vmatprep.subr.mxu0 0.0
    %1053 = vmatpush1.msra.mxu0 0.0
    %1054 = vmatprep.subr.mxu0 0.0
    %1055 = vmatpush1.msra.mxu0 0.0
    %1056 = vmatprep.subr.mxu0 0.0
    %1057 = vmatpush1.msra.mxu0 0.0
    %1058 = vmatprep.subr.mxu0 0.0
    %1059 = vmatpush1.msra.mxu0 0.0
    %1060 = vmatprep.subr.mxu0 0.0
    %1061 = vmatpush1.msra.mxu0 0.0
    %1062 = vmatprep.subr.mxu0 0.0
    %1063 = vmatpush1.msra.mxu0 0.0
    %1064 = vmatprep.subr.mxu0 0.0
    %1065 = vmatpush1.msra.mxu0 0.0
    %1066 = vmatprep.subr.mxu0 0.0
    %1067 = vmatpush1.msra.mxu0 0.0
    %1068 = vmatprep.subr.mxu0 0.0
    %1069 = vmatpush1.msra.mxu0 0.0
    %1070 = vmatprep.mubr.f32.mxu0 0.0
    %1071 = vmatmul.mubr.f32.gmra.mrb[0].mxu0 %v1004
    %v1072 = vpop.f32.mrb[0].mxu0
    %v1073 = vadd.f32 0.0, %v1072
    %v1074 = vpop.f32.mrb[0].mxu0
    %1075 = vdwg.mxu0
    %vm1076 = vcmask 64512
    %v1078 = vsel %vm1076, %v999, 0
    %1080 = vmatprep.subr.mxu0 0.0
    %1081 = vmatpush1.msra.mxu0 %v49
    %1082 = vmatprep.subr.mxu0 0.0
    %1083 = vmatpush1.msra.mxu0 0.0
    %1084 = vmatprep.subr.mxu0 0.0
    %1085 = vmatpush1.msra.mxu0 0.0
    %1086 = vmatprep.subr.mxu0 0.0
    %1087 = vmatpush1.msra.mxu0 0.0
    %1088 = vmatprep.subr.mxu0 0.0
    %1089 = vmatpush1.msra.mxu0 0.0
    %1090 = vmatprep.subr.mxu0 0.0
    %1091 = vmatpush1.msra.mxu0 0.0
    %1092 = vmatprep.subr.mxu0 0.0
    %1093 = vmatpush1.msra.mxu0 0.0
    %1094 = vmatprep.subr.mxu0 0.0
    %1095 = vmatpush1.msra.mxu0 0.0
    %1096 = vmatprep.subr.mxu0 0.0
    %1097 = vmatpush1.msra.mxu0 0.0
    %1098 = vmatprep.subr.mxu0 0.0
    %1099 = vmatpush1.msra.mxu0 0.0
    %1100 = vmatprep.subr.mxu0 0.0
    %1101 = vmatpush1.msra.mxu0 0.0
    %1102 = vmatprep.subr.mxu0 0.0
    %1103 = vmatpush1.msra.mxu0 0.0
    %1104 = vmatprep.subr.mxu0 0.0
    %1105 = vmatpush1.msra.mxu0 0.0
    %1106 = vmatprep.subr.mxu0 0.0
    %1107 = vmatpush1.msra.mxu0 0.0
    %1108 = vmatprep.subr.mxu0 0.0
    %1109 = vmatpush1.msra.mxu0 0.0
    %1110 = vmatprep.subr.mxu0 0.0
    %1111 = vmatpush1.msra.mxu0 0.0
    %1112 = vmatprep.subr.mxu0 0.0
    %1113 = vmatpush1.msra.mxu0 0.0
    %1114 = vmatprep.subr.mxu0 0.0
    %1115 = vmatpush1.msra.mxu0 0.0
    %1116 = vmatprep.subr.mxu0 0.0
    %1117 = vmatpush1.msra.mxu0 0.0
    %1118 = vmatprep.subr.mxu0 0.0
    %1119 = vmatpush1.msra.mxu0 0.0
    %1120 = vmatprep.subr.mxu0 0.0
    %1121 = vmatpush1.msra.mxu0 0.0
    %1122 = vmatprep.subr.mxu0 0.0
    %1123 = vmatpush1.msra.mxu0 0.0
    %1124 = vmatprep.subr.mxu0 0.0
    %1125 = vmatpush1.msra.mxu0 0.0
    %1126 = vmatprep.subr.mxu0 0.0
    %1127 = vmatpush1.msra.mxu0 0.0
    %1128 = vmatprep.subr.mxu0 0.0
    %1129 = vmatpush1.msra.mxu0 0.0
    %1130 = vmatprep.subr.mxu0 0.0
    %1131 = vmatpush1.msra.mxu0 0.0
    %1132 = vmatprep.subr.mxu0 0.0
    %1133 = vmatpush1.msra.mxu0 0.0
    %1134 = vmatprep.subr.mxu0 0.0
    %1135 = vmatpush1.msra.mxu0 0.0
    %1136 = vmatprep.subr.mxu0 0.0
    %1137 = vmatpush1.msra.mxu0 0.0
    %1138 = vmatprep.subr.mxu0 0.0
    %1139 = vmatpush1.msra.mxu0 0.0
    %1140 = vmatprep.subr.mxu0 0.0
    %1141 = vmatpush1.msra.mxu0 0.0
    %1142 = vmatprep.subr.mxu0 0.0
    %1143 = vmatpush1.msra.mxu0 0.0
    %1144 = vmatprep.mubr.f32.mxu0 0.0
    %1145 = vmatmul.mubr.f32.gmra.mrb[0].mxu0 %v1078
    %v1146 = vpop.f32.mrb[0].mxu0
    %v1147 = vadd.f32 %v1073, %v1146
    %v1148 = vpop.f32.mrb[0].mxu0
    %1149 = vdwg.mxu0
    %v1150 = vadd.f32 %v1147, %v71
    %v1151 = vmax.f32 %v1150, 0.0
    %vm1152 = vcmask 523264
    %v1154 = vsel %vm1152, %v1151, 0
    %1156 = vmatprep.subr.mxu0 0.0
    %1157 = vmatpush1.msra.mxu0 %v54
    %1158 = vmatprep.subr.mxu0 0.0
    %1159 = vmatpush1.msra.mxu0 %v55
    %1160 = vmatprep.subr.mxu0 0.0
    %1161 = vmatpush1.msra.mxu0 %v56
    %1162 = vmatprep.subr.mxu0 0.0
    %1163 = vmatpush1.msra.mxu0 %v57
    %1164 = vmatprep.subr.mxu0 0.0
    %1165 = vmatpush1.msra.mxu0 %v58
    %1166 = vmatprep.subr.mxu0 0.0
    %1167 = vmatpush1.msra.mxu0 %v59
    %1168 = vmatprep.subr.mxu0 0.0
    %1169 = vmatpush1.msra.mxu0 %v60
    %1170 = vmatprep.subr.mxu0 0.0
    %1171 = vmatpush1.msra.mxu0 %v61
    %1172 = vmatprep.subr.mxu0 0.0
    %1173 = vmatpush1.msra.mxu0 0.0
    %1174 = vmatprep.subr.mxu0 0.0
    %1175 = vmatpush1.msra.mxu0 0.0
    %1176 = vmatprep.subr.mxu0 0.0
    %1177 = vmatpush1.msra.mxu0 0.0
    %1178 = vmatprep.subr.mxu0 0.0
    %1179 = vmatpush1.msra.mxu0 0.0
    %1180 = vmatprep.subr.mxu0 0.0
    %1181 = vmatpush1.msra.mxu0 0.0
    %1182 = vmatprep.subr.mxu0 0.0
    %1183 = vmatpush1.msra.mxu0 0.0
    %1184 = vmatprep.subr.mxu0 0.0
    %1185 = vmatpush1.msra.mxu0 0.0
    %1186 = vmatprep.subr.mxu0 0.0
    %1187 = vmatpush1.msra.mxu0 0.0
    %1188 = vmatprep.subr.mxu0 0.0
    %1189 = vmatpush1.msra.mxu0 0.0
    %1190 = vmatprep.subr.mxu0 0.0
    %1191 = vmatpush1.msra.mxu0 0.0
    %1192 = vmatprep.subr.mxu0 0.0
    %1193 = vmatpush1.msra.mxu0 0.0
    %1194 = vmatprep.subr.mxu0 0.0
    %1195 = vmatpush1.msra.mxu0 0.0
    %1196 = vmatprep.subr.mxu0 0.0
    %1197 = vmatpush1.msra.mxu0 0.0
    %1198 = vmatprep.subr.mxu0 0.0
    %1199 = vmatpush1.msra.mxu0 0.0
    %1200 = vmatprep.subr.mxu0 0.0
    %1201 = vmatpush1.msra.mxu0 0.0
    %1202 = vmatprep.subr.mxu0 0.0
    %1203 = vmatpush1.msra.mxu0 0.0
    %1204 = vmatprep.subr.mxu0 0.0
    %1205 = vmatpush1.msra.mxu0 0.0
    %1206 = vmatprep.subr.mxu0 0.0
    %1207 = vmatpush1.msra.mxu0 0.0
    %1208 = vmatprep.subr.mxu0 0.0
    %1209 = vmatpush1.msra.mxu0 0.0
    %1210 = vmatprep.subr.mxu0 0.0
    %1211 = vmatpush1.msra.mxu0 0.0
    %1212 = vmatprep.subr.mxu0 0.0
    %1213 = vmatpush1.msra.mxu0 0.0
    %1214 = vmatprep.subr.mxu0 0.0
    %1215 = vmatpush1.msra.mxu0 0.0
    %1216 = vmatprep.subr.mxu0 0.0
    %1217 = vmatpush1.msra.mxu0 0.0
    %1218 = vmatprep.subr.mxu0 0.0
    %1219 = vmatpush1.msra.mxu0 0.0
    %1220 = vmatprep.mubr.f32.mxu0 0.0
    %1221 = vmatmul.mubr.f32.gmra.mrb[0].mxu0 %v1154
    %v1222 = vpop.f32.mrb[0].mxu0
    %v1223 = vadd.f32 %v72, %v1222
    %v1224 = vpop.f32.mrb[0].mxu0
    %1225 = vdwg.mxu0
    %v1226 = vmax.f32 %v1223, 0.0
    %v1228 = vsel %vm1152, %v1226, 0
    %1230 = vmatprep.subr.mxu0 0.0
    %1231 = vmatpush1.msra.mxu0 %v62
    %1232 = vmatprep.subr.mxu0 0.0
    %1233 = vmatpush1.msra.mxu0 %v63
    %1234 = vmatprep.subr.mxu0 0.0
    %1235 = vmatpush1.msra.mxu0 %v64
    %1236 = vmatprep.subr.mxu0 0.0
    %1237 = vmatpush1.msra.mxu0 %v65
    %1238 = vmatprep.subr.mxu0 0.0
    %1239 = vmatpush1.msra.mxu0 %v66
    %1240 = vmatprep.subr.mxu0 0.0
    %1241 = vmatpush1.msra.mxu0 %v67
    %1242 = vmatprep.subr.mxu0 0.0
    %1243 = vmatpush1.msra.mxu0 %v68
    %1244 = vmatprep.subr.mxu0 0.0
    %1245 = vmatpush1.msra.mxu0 %v69
    %1246 = vmatprep.subr.mxu0 0.0
    %1247 = vmatpush1.msra.mxu0 0.0
    %1248 = vmatprep.subr.mxu0 0.0
    %1249 = vmatpush1.msra.mxu0 0.0
    %1250 = vmatprep.subr.mxu0 0.0
    %1251 = vmatpush1.msra.mxu0 0.0
    %1252 = vmatprep.subr.mxu0 0.0
    %1253 = vmatpush1.msra.mxu0 0.0
    %1254 = vmatprep.subr.mxu0 0.0
    %1255 = vmatpush1.msra.mxu0 0.0
    %1256 = vmatprep.subr.mxu0 0.0
    %1257 = vmatpush1.msra.mxu0 0.0
    %1258 = vmatprep.subr.mxu0 0.0
    %1259 = vmatpush1.msra.mxu0 0.0
    %1260 = vmatprep.subr.mxu0 0.0
    %1261 = vmatpush1.msra.mxu0 0.0
    %1262 = vmatprep.subr.mxu0 0.0
    %1263 = vmatpush1.msra.mxu0 0.0
    %1264 = vmatprep.subr.mxu0 0.0
    %1265 = vmatpush1.msra.mxu0 0.0
    %1266 = vmatprep.subr.mxu0 0.0
    %1267 = vmatpush1.msra.mxu0 0.0
    %1268 = vmatprep.subr.mxu0 0.0
    %1269 = vmatpush1.msra.mxu0 0.0
    %1270 = vmatprep.subr.mxu0 0.0
    %1271 = vmatpush1.msra.mxu0 0.0
    %1272 = vmatprep.subr.mxu0 0.0
    %1273 = vmatpush1.msra.mxu0 0.0
    %1274 = vmatprep.subr.mxu0 0.0
    %1275 = vmatpush1.msra.mxu0 0.0
    %1276 = vmatprep.subr.mxu0 0.0
    %1277 = vmatpush1.msra.mxu0 0.0
    %1278 = vmatprep.subr.mxu0 0.0
    %1279 = vmatpush1.msra.mxu0 0.0
    %1280 = vmatprep.subr.mxu0 0.0
    %1281 = vmatpush1.msra.mxu0 0.0
    %1282 = vmatprep.subr.mxu0 0.0
    %1283 = vmatpush1.msra.mxu0 0.0
    %1284 = vmatprep.subr.mxu0 0.0
    %1285 = vmatpush1.msra.mxu0 0.0
    %1286 = vmatprep.subr.mxu0 0.0
    %1287 = vmatpush1.msra.mxu0 0.0
    %1288 = vmatprep.subr.mxu0 0.0
    %1289 = vmatpush1.msra.mxu0 0.0
    %1290 = vmatprep.subr.mxu0 0.0
    %1291 = vmatpush1.msra.mxu0 0.0
    %1292 = vmatprep.subr.mxu0 0.0
    %1293 = vmatpush1.msra.mxu0 0.0
    %1294 = vmatprep.mubr.f32.mxu0 0.0
    %1295 = vmatmul.mubr.f32.gmra.mrb[0].mxu0 %v1228
    %v1296 = vpop.f32.mrb[0].mxu0
    %v1297 = vadd.f32 %v73, %v1296
    %v1298 = vpop.f32.mrb[0].mxu0
    %1299 = vdwg.mxu0
    %vm1300 = vcmask 57344
    %v1301 = vsel %vm1300, %v1297, -inf
    %1302 = vmax.xlane.f32.xlu0 %v1301
    %v1303 = vpop.xlane.xlu0 %1302
    %v1304 = vsub.f32 %v1297, %v1303
    %v1305 = vmul.f32 %v1304, 1.442695
    %v1306 = vpow.pop %v1305
    %v1307 = vsel %vm1300, %v1306, 0.0
    %1308 = vadd.xlane.f32.xlu0 %v1307
    %v1309 = vpop.xlane.xlu0 %1308
    %v1310 = vrcp.pop %v1309
    %v1311 = vmul.f32 %v1306, %v1310
    %1312 = vst.msk [vmem:[#allocation7] sm:$0x1] %vm1300, %v1311
    // Predicated region
    $region22: #{tpu_custom_call.1} parent=1 // pred_check
      _
    $region23: #{tpu_custom_call.1} parent=1 // pred_check_branch
      %1314 = sbr.rel (0) target = $region25
    $region24: #{tpu_custom_call.1} parent=1 // pred_region
      %s1316 = ssub.s32 16, 16
      %1317 = vsyncadd [#allocation4], %s1316
      %s1319 = sshll.u32 [#allocation7], 4
      %s1320 = int_to_ptr.vmem [resolvable:$true] %s1319
      %1322 = dma.vmem_to_hbm [thread:$0]  %s1320, 16, %s3, [#allocation4]
    $region25: #{tpu_custom_call.1} parent=1 // pred_fallthru
      _
    // Predicated region
    $region26: #{tpu_custom_call.1} parent=1 // pred_check
      _
    $region27: #{tpu_custom_call.1} parent=1 // pred_check_branch
      %1324 = sbr.rel (0) target = $region29
    $region28: #{tpu_custom_call.1} parent=1 // pred_region
      %1325 = dma.done [#allocation4], 16
    $region29: #{tpu_custom_call.1} parent=1 // pred_fallthru
      _
    %1326 = vsyncpa [#allocation3], 1
    %1327 = vsyncpa [#allocation6], 1
    %1328 = vsyncpa [#allocation4], 1

</llo_original>
